<compile_context>
chip_gen: v6e
topology: v6e:2x2x1
jax: 0.10.0
libtpu: 0.0.40
codegen_flags: <defaults>
</compile_context>

<pallas_src>
import functools
import inspect
import math

import jax
import jax.numpy as jnp
from jax import lax
from jax.experimental import pallas as pl
from jax.experimental.pallas import tpu as pltpu


# ---------------------------------------------------------------------------
# small compatibility / hardware helpers
# ---------------------------------------------------------------------------
_CompilerParams = getattr(pltpu, "CompilerParams", None)
if _CompilerParams is None:            # older JAX releases
    _CompilerParams = pltpu.TPUCompilerParams


def _supports_single_buffering():
    if not hasattr(pl, "Buffered"):
        return False
    try:
        return "pipeline_mode" in inspect.signature(pl.BlockSpec).parameters
    except Exception:
        return False


_SINGLE_BUFFER = _supports_single_buffering()


def _const_spec(shape):
    """BlockSpec for a grid-invariant input; single-buffered when supported."""
    ndim = len(shape)
    idx = lambda b: (0,) * ndim
    if _SINGLE_BUFFER:
        return pl.BlockSpec(shape, idx, pipeline_mode=pl.Buffered(1))
    return pl.BlockSpec(shape, idx)


def _vmem_limit_bytes():
    # Generation-aware VMEM budget: ~108 MiB on v5e/v6e (128 MiB physical),
    # ~54 MiB on v7x (64 MiB per TensorCore). Falls back to compiler default.
    try:
        cap = getattr(pltpu.get_tpu_info(), "vmem_capacity_bytes", None)
    except Exception:
        cap = None
    if cap is None:
        return None
    return int(cap * 0.85)


def _pick_ffn_block(ffn, max_block=2048):
    # largest divisor of ffn that is <= max_block (bounds the (T, block) GELU tensor)
    if ffn <= max_block:
        return ffn
    for blk in range(max_block, 0, -1):
        if ffn % blk == 0:
            return blk
    return ffn


# ---------------------------------------------------------------------------
# elementwise helpers
# ---------------------------------------------------------------------------
def _erf(x):
    # Abramowitz & Stegun 7.1.26 (|err| < 1.5e-7); exact-GELU erf without relying
    # on a native erf lowering inside Mosaic (one EUP exp + VPU polynomial).
    sign = jnp.where(x >= 0.0, 1.0, -1.0)
    a = jnp.abs(x)
    t = 1.0 / (1.0 + 0.3275911 * a)
    poly = t * (0.254829592 + t * (-0.284496736 + t * (1.421413741 +
               t * (-1.453152027 + t * 1.061405429))))
    return sign * (1.0 - poly * jnp.exp(-a * a))


def _gelu_exact(x):
    # matches torch.nn.functional.gelu(approximate='none') to ~1.5e-7
    # TODO(synk): on v6e/v7x this could run in bf16 (2x VPU throughput); kept f32 for parity.
    return 0.5 * x * (1.0 + _erf(x * (1.0 / math.sqrt(2.0))))


# ---------------------------------------------------------------------------
# Pallas kernel: one full transformer layer for a single batch element
# ---------------------------------------------------------------------------
def transformer_layer_kernel(
    x_ref, keep_ref, cos_ref, sin_ref,
    w5_ref, b5_ref,
    w_proj_ref, b_proj_ref,
    w_fc1_ref, b_fc1_ref,
    w_fc2_ref, b_fc2_ref,
    *out_and_scratch,
    n_head, ffn_block, return_fc):
    if return_fc:
        out_ref, fc_ref, attn_acc = out_and_scratch
    else:
        out_ref, attn_acc = out_and_scratch
        fc_ref = None

    x = x_ref[0]          # (T, E)  f32
    keep = keep_ref[0]    # (T, 1)  f32: 1.0 = keep, 0.0 = padded token
    T, E = x.shape
    hd = E // n_head
    scale = 1.0 / math.sqrt(hd)
    eps = 1e-5
    bf16 = jnp.bfloat16
    f32 = jnp.float32

    def ln_normalize(v):
        # LayerNorm without the affine part: gamma/beta are folded into the
        # downstream matmul weights/biases in the wrapper.
        mu = jnp.mean(v, axis=-1, keepdims=True)
        var = jnp.mean((v - mu) ** 2, axis=-1, keepdims=True)   # biased, like nn.LayerNorm
        return (v - mu) * lax.rsqrt(var + eps)

    # ---- attention block ---------------------------------------------------
    # Single (T,E) x (E,5E) bf16 matmul producing [q, q@R, k, k@R, v]; RoPE's
    # rotate-half R (signed permutation) and the LN1 affine are pre-folded into
    # the weights, so RoPE below is just two (T,hd) multiply-adds per head.
    # TODO(synk): if MXU-bound at production shapes, drop the R fold (keep the 3E
    # projection) and rotate in-kernel instead.
    xn = ln_normalize(x)
    qkv5 = jnp.dot(xn.astype(bf16), w5_ref[...],
                   preferred_element_type=f32) + b5_ref[...]

    cos = cos_ref[...]    # (T, hd) — shared by every head
    sin = sin_ref[...]

    # Per-head attention on (T, hd) slabs; head outputs go straight into a bf16
    # VMEM scratch accumulator (no concatenate, no full (T,E) q/k/v copies).
    # TODO(synk): production shapes want a (batch, head, q-block) gridded
    # flash-style attention kernel with head_dim laid out as a multiple of 128.
    for h in range(n_head):
        lo, hi = h * hd, (h + 1) * hd
        q_h = (qkv5[:, 0 * E + lo:0 * E + hi] * cos +
               qkv5[:, 1 * E + lo:1 * E + hi] * sin).astype(bf16)
        k_h = (qkv5[:, 2 * E + lo:2 * E + hi] * cos +
               qkv5[:, 3 * E + lo:3 * E + hi] * sin).astype(bf16)
        v_h = qkv5[:, 4 * E + lo:4 * E + hi].astype(bf16)
        # contract over head_dim directly (no materialized k_h.T / XLU transpose)
        s = lax.dot_general(q_h, k_h, (((1,), (1,)), ((), ())),
                            preferred_element_type=f32) * scale
        s = s - jnp.max(s, axis=-1, keepdims=True)
        p = jnp.exp(s)
        p = p * pl.reciprocal(jnp.sum(p, axis=-1, keepdims=True), approx=True)
        attn_acc[:, lo:hi] = jnp.dot(p.astype(bf16), v_h,
                                     preferred_element_type=f32).astype(bf16)

    proj = jnp.dot(attn_acc[...], w_proj_ref[...],
                   preferred_element_type=f32) + b_proj_ref[...]
    x1 = x + proj * keep

    # ---- feed-forward block (tiled over the ffn dimension) ------------------
    xn2 = ln_normalize(x1).astype(bf16)      # LN2 affine folded into w_fc1 / b_fc1
    ffn = w_fc1_ref.shape[1]
    fc = jnp.zeros((T, E), f32)
    for c0 in range(0, ffn, ffn_block):
        c1 = c0 + ffn_block
        h1 = jnp.dot(xn2, w_fc1_ref[:, c0:c1],
                     preferred_element_type=f32) + b_fc1_ref[:, c0:c1]
        h1 = _gelu_exact(h1 * keep)          # keep (T,1) broadcasts over the ffn block
        fc = fc + jnp.dot(h1.astype(bf16), w_fc2_ref[c0:c1, :],
                          preferred_element_type=f32)
    fc = (fc + b_fc2_ref[...]) * keep        # == pre-residual FFN output (torch fc_result)
    out_ref[0] = x1 + fc
    if fc_ref is not None:
        fc_ref[0] = fc


# ---------------------------------------------------------------------------
# Wrapper: parameter folding + pallas_call plumbing
# ---------------------------------------------------------------------------
def _rope_tables(T, hd):
    theta = 1.0 / (10000.0 ** (jnp.arange(0, hd, 2, dtype=jnp.float32) / hd))
    ang = jnp.outer(jnp.arange(T, dtype=jnp.float32), theta)
    ang = jnp.concatenate([ang, ang], axis=-1)        # (T, hd), matches .repeat(1, 2)
    return jnp.cos(ang), jnp.sin(ang)


def _rotate_half_matrix(E, n_head):
    # block-diagonal R with per-head block [[0, I], [-I, 0]] so that x @ R == rotate_half(x)
    hd = E // n_head
    half = hd // 2
    Rh = jnp.zeros((hd, hd), jnp.float32)
    Rh = Rh.at[half:, :half].set(-jnp.eye(half, dtype=jnp.float32))
    Rh = Rh.at[:half, half:].set(jnp.eye(half, dtype=jnp.float32))
    return jnp.kron(jnp.eye(n_head, dtype=jnp.float32), Rh)   # (E, E)


def transformer_layer(x, padding_mask_emb, params, n_head, return_fc=False):
    B, T, E = x.shape
    assert E % n_head == 0, "embed_dim must be divisible by n_head"
    hd = E // n_head
    assert hd % 2 == 0, "head_dim must be even for RoPE"
    ffn = params["w_fc1"].shape[1]
    ffn_block = _pick_ffn_block(ffn)

    cos, sin = _rope_tables(T, hd)        # (T, hd): n_head x smaller than per-E tables

    # Per-token keep mask (B, T, 1); the module's padding_mask_emb is a per-token mask
    # broadcast over E, so one column suffices (saves HBM/VMEM traffic).
    if padding_mask_emb is None:
        keep = jnp.ones((B, T, 1), jnp.float32)
    else:
        keep = (~padding_mask_emb[..., :1]).astype(jnp.float32)

    # --- fold rotate-half + LN1 affine into the QKV projection (exact in f32) ----
    # W5 = diag(ln1_w) @ [Wq, Wq R, Wk, Wk R, Wv],  b5 = [bq, bq R, ...] + ln1_b @ W5
    R = _rotate_half_matrix(E, n_head)
    w_attn, b_attn = params["w_attn"], params["b_attn"]
    wq, wk, wv = w_attn[:, :E], w_attn[:, E:2 * E], w_attn[:, 2 * E:]
    bq, bk, bv = b_attn[:, :E], b_attn[:, E:2 * E], b_attn[:, 2 * E:]
    w5 = jnp.concatenate([wq, wq @ R, wk, wk @ R, wv], axis=1)            # (E, 5E) f32
    b5 = jnp.concatenate([bq, bq @ R, bk, bk @ R, bv], axis=1)            # (1, 5E) f32
    b5 = b5 + params["ln1_b"] @ w5
    w5 = (w5 * params["ln1_w"].reshape(E, 1)).astype(jnp.bfloat16)

    # --- fold the LN2 affine into fc1 --------------------------------------------
    b_fc1 = params["b_fc1"] + params["ln2_b"] @ params["w_fc1"]
    w_fc1 = (params["w_fc1"] * params["ln2_w"].reshape(E, 1)).astype(jnp.bfloat16)

    w_proj = params["w_proj"].astype(jnp.bfloat16)
    w_fc2 = params["w_fc2"].astype(jnp.bfloat16)

    kernel = functools.partial(transformer_layer_kernel, n_head=n_head,
                               ffn_block=ffn_block, return_fc=return_fc)

    out_shape = [jax.ShapeDtypeStruct((B, T, E), jnp.float32)]
    out_specs = [pl.BlockSpec((1, T, E), lambda b: (b, 0, 0))]
    if return_fc:
        out_shape.append(jax.ShapeDtypeStruct((B, T, E), jnp.float32))
        out_specs.append(pl.BlockSpec((1, T, E), lambda b: (b, 0, 0)))

    outs = pl.pallas_call(
        kernel,
        out_shape=tuple(out_shape),
        grid=(B,),
        in_specs=[
            pl.BlockSpec((1, T, E), lambda b: (b, 0, 0)),   # x
            pl.BlockSpec((1, T, 1), lambda b: (b, 0, 0)),   # keep mask (per-token)
            _const_spec((T, hd)),                           # rope cos (per-head table)
            _const_spec((T, hd)),                           # rope sin
            _const_spec((E, 5 * E)),                        # [Wq, WqR, Wk, WkR, Wv] (ln1 folded) bf16
            _const_spec((1, 5 * E)),                        # matching bias                       f32
            _const_spec((E, E)),                            # proj W  bf16
            _const_spec((1, E)),                            # proj b
            _const_spec((E, ffn)),                          # fc1 W (ln2 folded)  bf16
            _const_spec((1, ffn)),                          # fc1 b (ln2 folded)
            _const_spec((ffn, E)),                          # fc2 W  bf16
            _const_spec((1, E)),                            # fc2 b
        ],
        out_specs=tuple(out_specs),
        scratch_shapes=[pltpu.VMEM((T, E), jnp.bfloat16)],  # per-head attention accumulator
        compiler_params=_CompilerParams(
            dimension_semantics=("parallel",),
            vmem_limit_bytes=_vmem_limit_bytes()),
    )(
        x, keep, cos, sin,
        w5, b5,
        w_proj, params["b_proj"],
        w_fc1, b_fc1,
        w_fc2, params["b_fc2"],
    )
    if return_fc:
        return outs[0], outs[1]
    return outs[0], None


# ---------------------------------------------------------------------------
# Pure-JAX reference (mirrors the PyTorch forward op-for-op; bf16 at the matmuls
# to mirror the kernel's MXU precision, f32 accumulation everywhere)
# ---------------------------------------------------------------------------
def reference(x, padding_mask_emb, params, n_head):
    B, T, E = x.shape
    hd = E // n_head
    ffn = params["w_fc1"].shape[1]
    keep = (~padding_mask_emb).astype(jnp.float32)            # full (B,T,E) mask, like torch

    def mm(a, w):
        return jnp.dot(a.astype(jnp.bfloat16), w.astype(jnp.bfloat16),
                       preferred_element_type=jnp.float32)

    theta = 1.0 / (10000.0 ** (jnp.arange(0, hd, 2, dtype=jnp.float32) / hd))
    ang = jnp.outer(jnp.arange(T, dtype=jnp.float32), theta)
    ang = jnp.concatenate([ang, ang], axis=-1)
    rope_cos, rope_sin = jnp.cos(ang), jnp.sin(ang)

    def ln(v, w, b):
        mu = v.mean(-1, keepdims=True)
        var = ((v - mu) ** 2).mean(-1, keepdims=True)
        return (v - mu) * jax.lax.rsqrt(var + 1e-5) * w + b

    xn = ln(x, params["ln1_w"], params["ln1_b"])
    qkv = mm(xn, params["w_attn"]) + params["b_attn"]
    q, k, v = jnp.split(qkv, 3, axis=-1)
    heads = lambda t: t.reshape(B, T, n_head, hd).transpose(0, 2, 1, 3)
    q, k, v = heads(q), heads(k), heads(v)

    def rope(t):
        x1, x2 = t[..., : hd // 2], t[..., hd // 2:]
        return t * rope_cos + jnp.concatenate([-x2, x1], -1) * rope_sin

    q, k = rope(q), rope(k)
    s = jnp.einsum("bhqd,bhkd->bhqk", q, k) / math.sqrt(hd)
    p = jax.nn.softmax(s, axis=-1)
    o = jnp.einsum("bhqk,bhkd->bhqd", p, v).transpose(0, 2, 1, 3).reshape(B, T, E)
    x1_ = x + (mm(o, params["w_proj"]) + params["b_proj"]) * keep

    xn2 = ln(x1_, params["ln2_w"], params["ln2_b"])
    keep_ffn = jnp.concatenate([keep] * (ffn // E), axis=-1)
    h = jax.nn.gelu((mm(xn2, params["w_fc1"]) + params["b_fc1"]) * keep_ffn,
                    approximate=False)
    fc = (mm(h, params["w_fc2"]) + params["b_fc2"]) * keep
    return x1_ + fc, fc


def init_params(key, E, ffn):
    ks = jax.random.split(key, 12)
    s = 0.05
    return {
        "ln1_w": 1.0 + s * jax.random.normal(ks[0], (1, E), jnp.float32),
        "ln1_b": s * jax.random.normal(ks[1], (1, E), jnp.float32),
        "ln2_w": 1.0 + s * jax.random.normal(ks[2], (1, E), jnp.float32),
        "ln2_b": s * jax.random.normal(ks[3], (1, E), jnp.float32),
        "w_attn": s * jax.random.normal(ks[4], (E, 3 * E), jnp.float32),
        "b_attn": s * jax.random.normal(ks[5], (1, 3 * E), jnp.float32),
        "w_proj": s * jax.random.normal(ks[6], (E, E), jnp.float32),
        "b_proj": s * jax.random.normal(ks[7], (1, E), jnp.float32),
        "w_fc1": s * jax.random.normal(ks[8], (E, ffn), jnp.float32),
        "b_fc1": s * jax.random.normal(ks[9], (1, ffn), jnp.float32),
        "w_fc2": s * jax.random.normal(ks[10], (ffn, E), jnp.float32),
        "b_fc2": s * jax.random.normal(ks[11], (1, E), jnp.float32),
    }


if __name__ == "__main__":
    B, T, E, n_head = 2, 8, 32, 4            # embed=32, heads=4, head_dim=8
    ffn = 4 * E                              # ffn_embed_dim = 128
    key = jax.random.PRNGKey(0)
    kx, kp = jax.random.split(key)

    x = jax.random.normal(kx, (B, T, E), jnp.float32)
    params = init_params(kp, E, ffn)

    # padding mask: True where padded (batch 1 has its last 2 tokens padded)
    lengths = jnp.array([T, T - 2])
    pad_tok = jnp.arange(T)[None, :] >= lengths[:, None]            # (B, T) bool
    padding_mask_emb = jnp.broadcast_to(pad_tok[:, :, None], (B, T, E))

    out, fc = transformer_layer(x, padding_mask_emb, params, n_head, return_fc=True)
    out = jax.block_until_ready(out)
    fc = jax.block_until_ready(fc)

    ref_out, ref_fc = reference(x, padding_mask_emb, params, n_head)
    tol = dict(atol=5e-3, rtol=5e-3)
    ok = bool(jnp.allclose(out, ref_out, **tol)) and bool(jnp.allclose(fc, ref_fc, **tol))
    if not ok:
        err = float(jnp.max(jnp.abs(out - ref_out)))
        raise RuntimeError(f"Pallas kernel mismatch vs reference (max |d_out| = {err:.3e})")

    print("KERNEL_OK")
</pallas_src>

<mosaic_0001>
module attributes {stable_mosaic.version = 11 : i64} {
  func.func @transformer_layer_kernel(%arg0: i32, %arg1: memref<1x8x32xf32, #tpu.memory_space<vmem>>, %arg2: memref<1x8x1xf32, #tpu.memory_space<vmem>>, %arg3: memref<8x8xf32, #tpu.memory_space<vmem>>, %arg4: memref<8x8xf32, #tpu.memory_space<vmem>>, %arg5: memref<32x160xbf16, #tpu.memory_space<vmem>>, %arg6: memref<1x160xf32, #tpu.memory_space<vmem>>, %arg7: memref<32x32xbf16, #tpu.memory_space<vmem>>, %arg8: memref<1x32xf32, #tpu.memory_space<vmem>>, %arg9: memref<32x128xbf16, #tpu.memory_space<vmem>>, %arg10: memref<1x128xf32, #tpu.memory_space<vmem>>, %arg11: memref<128x32xbf16, #tpu.memory_space<vmem>>, %arg12: memref<1x32xf32, #tpu.memory_space<vmem>>, %arg13: memref<1x8x32xf32, #tpu.memory_space<vmem>>, %arg14: memref<1x8x32xf32, #tpu.memory_space<vmem>>, %arg15: memref<8x32xbf16, #tpu.memory_space<vmem>>) attributes {dimension_semantics = [#tpu.dimension_semantics<parallel>], iteration_bounds = array<i64: 2>, scalar_prefetch = 0 : i64, scratch_operands = 1 : i64, tpu.core_type = #tpu.core_type<tc>, window_params = [{transform_indices = @transform_0, window_bounds = array<i64: 1, 8, 32>}, {transform_indices = @transform_1, window_bounds = array<i64: 1, 8, 1>}, {pipeline_mode = #tpu.pipeline_mode<synchronous>, transform_indices = @transform_2, window_bounds = array<i64: 8, 8>}, {pipeline_mode = #tpu.pipeline_mode<synchronous>, transform_indices = @transform_3, window_bounds = array<i64: 8, 8>}, {pipeline_mode = #tpu.pipeline_mode<synchronous>, transform_indices = @transform_4, window_bounds = array<i64: 32, 160>}, {pipeline_mode = #tpu.pipeline_mode<synchronous>, transform_indices = @transform_5, window_bounds = array<i64: 1, 160>}, {pipeline_mode = #tpu.pipeline_mode<synchronous>, transform_indices = @transform_6, window_bounds = array<i64: 32, 32>}, {pipeline_mode = #tpu.pipeline_mode<synchronous>, transform_indices = @transform_7, window_bounds = array<i64: 1, 32>}, {pipeline_mode = #tpu.pipeline_mode<synchronous>, transform_indices = @transform_8, window_bounds = array<i64: 32, 128>}, {pipeline_mode = #tpu.pipeline_mode<synchronous>, transform_indices = @transform_9, window_bounds = array<i64: 1, 128>}, {pipeline_mode = #tpu.pipeline_mode<synchronous>, transform_indices = @transform_10, window_bounds = array<i64: 128, 32>}, {pipeline_mode = #tpu.pipeline_mode<synchronous>, transform_indices = @transform_11, window_bounds = array<i64: 1, 32>}, {transform_indices = @transform_12, window_bounds = array<i64: 1, 8, 32>}, {transform_indices = @transform_13, window_bounds = array<i64: 1, 8, 32>}]} {
    %c0 = arith.constant 0 : index
    %c0_0 = arith.constant 0 : index
    %c0_1 = arith.constant 0 : index
    %0 = vector.load %arg1[%c0, %c0_0, %c0_1] : memref<1x8x32xf32, #tpu.memory_space<vmem>>, vector<1x8x32xf32>
    %1 = vector.shape_cast %0 : vector<1x8x32xf32> to vector<8x32xf32>
    %c0_2 = arith.constant 0 : index
    %c0_3 = arith.constant 0 : index
    %c0_4 = arith.constant 0 : index
    %2 = vector.load %arg2[%c0_2, %c0_3, %c0_4] : memref<1x8x1xf32, #tpu.memory_space<vmem>>, vector<1x8x1xf32>
    %3 = vector.shape_cast %2 : vector<1x8x1xf32> to vector<8x1xf32>
    %cst = arith.constant dense<0.000000e+00> : vector<8xf32>
    %4 = vector.multi_reduction <add>, %1, %cst [1] : vector<8x32xf32> to vector<8xf32>
    %5 = vector.shape_cast %4 : vector<8xf32> to vector<8x1xf32>
    %cst_5 = arith.constant 3.200000e+01 : f32
    %6 = vector.broadcast %cst_5 : f32 to vector<8x1xf32>
    %7 = arith.divf %5, %6 : vector<8x1xf32>
    %8 = vector.broadcast %7 : vector<8x1xf32> to vector<8x32xf32>
    %9 = arith.subf %1, %8 : vector<8x32xf32>
    %10 = arith.mulf %9, %9 : vector<8x32xf32>
    %cst_6 = arith.constant dense<0.000000e+00> : vector<8xf32>
    %11 = vector.multi_reduction <add>, %10, %cst_6 [1] : vector<8x32xf32> to vector<8xf32>
    %12 = vector.shape_cast %11 : vector<8xf32> to vector<8x1xf32>
    %cst_7 = arith.constant 3.200000e+01 : f32
    %13 = vector.broadcast %cst_7 : f32 to vector<8x1xf32>
    %14 = arith.divf %12, %13 : vector<8x1xf32>
    %15 = vector.broadcast %7 : vector<8x1xf32> to vector<8x32xf32>
    %16 = arith.subf %1, %15 : vector<8x32xf32>
    %cst_8 = arith.constant 9.99999974E-6 : f32
    %17 = vector.broadcast %cst_8 : f32 to vector<8x1xf32>
    %18 = arith.addf %14, %17 : vector<8x1xf32>
    %19 = math.rsqrt %18 : vector<8x1xf32>
    %20 = vector.broadcast %19 : vector<8x1xf32> to vector<8x32xf32>
    %21 = arith.mulf %16, %20 : vector<8x32xf32>
    %22 = arith.truncf %21 : vector<8x32xf32> to vector<8x32xbf16>
    %c0_9 = arith.constant 0 : index
    %c0_10 = arith.constant 0 : index
    %23 = vector.load %arg5[%c0_9, %c0_10] : memref<32x160xbf16, #tpu.memory_space<vmem>>, vector<32x160xbf16>
    %cst_11 = arith.constant dense<0.000000e+00> : vector<8x160xf32>
    %24 = tpu.matmul %22, %23, %cst_11 {dimension_numbers = #tpu.dot_dimension_numbers<[1], [0], [0], [1], [0, 0, 1, 1], [], []>} : vector<8x32xbf16>, vector<32x160xbf16>, vector<8x160xf32> -> vector<8x160xf32>
    %c0_12 = arith.constant 0 : index
    %c0_13 = arith.constant 0 : index
    %25 = vector.load %arg6[%c0_12, %c0_13] : memref<1x160xf32, #tpu.memory_space<vmem>>, vector<1x160xf32>
    %26 = vector.broadcast %25 : vector<1x160xf32> to vector<8x160xf32>
    %27 = arith.addf %24, %26 : vector<8x160xf32>
    %c0_14 = arith.constant 0 : index
    %c0_15 = arith.constant 0 : index
    %28 = vector.load %arg3[%c0_14, %c0_15] : memref<8x8xf32, #tpu.memory_space<vmem>>, vector<8x8xf32>
    %c0_16 = arith.constant 0 : index
    %c0_17 = arith.constant 0 : index
    %29 = vector.load %arg4[%c0_16, %c0_17] : memref<8x8xf32, #tpu.memory_space<vmem>>, vector<8x8xf32>
    %30 = vector.extract_strided_slice %27 {offsets = [0, 0], sizes = [8, 8], strides = [1, 1]} : vector<8x160xf32> to vector<8x8xf32>
    %31 = arith.mulf %30, %28 : vector<8x8xf32>
    %32 = vector.extract_strided_slice %27 {offsets = [0, 32], sizes = [8, 8], strides = [1, 1]} : vector<8x160xf32> to vector<8x8xf32>
    %33 = arith.mulf %32, %29 : vector<8x8xf32>
    %34 = arith.addf %31, %33 : vector<8x8xf32>
    %35 = arith.truncf %34 : vector<8x8xf32> to vector<8x8xbf16>
    %36 = vector.extract_strided_slice %27 {offsets = [0, 64], sizes = [8, 8], strides = [1, 1]} : vector<8x160xf32> to vector<8x8xf32>
    %37 = arith.mulf %36, %28 : vector<8x8xf32>
    %38 = vector.extract_strided_slice %27 {offsets = [0, 96], sizes = [8, 8], strides = [1, 1]} : vector<8x160xf32> to vector<8x8xf32>
    %39 = arith.mulf %38, %29 : vector<8x8xf32>
    %40 = arith.addf %37, %39 : vector<8x8xf32>
    %41 = arith.truncf %40 : vector<8x8xf32> to vector<8x8xbf16>
    %42 = vector.extract_strided_slice %27 {offsets = [0, 128], sizes = [8, 8], strides = [1, 1]} : vector<8x160xf32> to vector<8x8xf32>
    %43 = arith.truncf %42 : vector<8x8xf32> to vector<8x8xbf16>
    %cst_18 = arith.constant dense<0.000000e+00> : vector<8x8xf32>
    %44 = tpu.matmul %35, %41, %cst_18 {dimension_numbers = #tpu.dot_dimension_numbers<[1], [1], [0], [0], [0, 0, 1, 0], [], []>} : vector<8x8xbf16>, vector<8x8xbf16>, vector<8x8xf32> -> vector<8x8xf32>
    %cst_19 = arith.constant 0.353553385 : f32
    %45 = vector.broadcast %cst_19 : f32 to vector<8x8xf32>
    %46 = arith.mulf %44, %45 : vector<8x8xf32>
    %cst_20 = arith.constant dense<0xFF800000> : vector<8xf32>
    %47 = vector.multi_reduction <maximumf>, %46, %cst_20 [1] : vector<8x8xf32> to vector<8xf32>
    %48 = vector.shape_cast %47 : vector<8xf32> to vector<8x1xf32>
    %49 = vector.broadcast %48 : vector<8x1xf32> to vector<8x8xf32>
    %50 = arith.subf %46, %49 : vector<8x8xf32>
    %51 = math.exp %50 : vector<8x8xf32>
    %cst_21 = arith.constant dense<0.000000e+00> : vector<8xf32>
    %52 = vector.multi_reduction <add>, %51, %cst_21 [1] : vector<8x8xf32> to vector<8xf32>
    %53 = vector.shape_cast %52 : vector<8xf32> to vector<8x1xf32>
    %54 = tpu.reciprocal %53 {approx = true} : vector<8x1xf32> -> vector<8x1xf32>
    %55 = vector.broadcast %54 : vector<8x1xf32> to vector<8x8xf32>
    %56 = arith.mulf %51, %55 : vector<8x8xf32>
    %57 = arith.truncf %56 : vector<8x8xf32> to vector<8x8xbf16>
    %cst_22 = arith.constant dense<0.000000e+00> : vector<8x8xf32>
    %58 = tpu.matmul %57, %43, %cst_22 {dimension_numbers = #tpu.dot_dimension_numbers<[1], [0], [0], [1], [0, 0, 1, 1], [], []>} : vector<8x8xbf16>, vector<8x8xbf16>, vector<8x8xf32> -> vector<8x8xf32>
    %59 = arith.truncf %58 : vector<8x8xf32> to vector<8x8xbf16>
    %c0_23 = arith.constant 0 : index
    %c0_24 = arith.constant 0 : index
    %60 = vector.load %arg15[%c0_23, %c0_24] : memref<8x32xbf16, #tpu.memory_space<vmem>>, vector<8x8xbf16>
    tpu.vector_store %arg15[%c0_23, %c0_24], %59 {strides = array<i32>} : memref<8x32xbf16, #tpu.memory_space<vmem>>, vector<8x8xbf16>,
    %61 = vector.extract_strided_slice %27 {offsets = [0, 8], sizes = [8, 8], strides = [1, 1]} : vector<8x160xf32> to vector<8x8xf32>
    %62 = arith.mulf %61, %28 : vector<8x8xf32>
    %63 = vector.extract_strided_slice %27 {offsets = [0, 40], sizes = [8, 8], strides = [1, 1]} : vector<8x160xf32> to vector<8x8xf32>
    %64 = arith.mulf %63, %29 : vector<8x8xf32>
    %65 = arith.addf %62, %64 : vector<8x8xf32>
    %66 = arith.truncf %65 : vector<8x8xf32> to vector<8x8xbf16>
    %67 = vector.extract_strided_slice %27 {offsets = [0, 72], sizes = [8, 8], strides = [1, 1]} : vector<8x160xf32> to vector<8x8xf32>
    %68 = arith.mulf %67, %28 : vector<8x8xf32>
    %69 = vector.extract_strided_slice %27 {offsets = [0, 104], sizes = [8, 8], strides = [1, 1]} : vector<8x160xf32> to vector<8x8xf32>
    %70 = arith.mulf %69, %29 : vector<8x8xf32>
    %71 = arith.addf %68, %70 : vector<8x8xf32>
    %72 = arith.truncf %71 : vector<8x8xf32> to vector<8x8xbf16>
    %73 = vector.extract_strided_slice %27 {offsets = [0, 136], sizes = [8, 8], strides = [1, 1]} : vector<8x160xf32> to vector<8x8xf32>
    %74 = arith.truncf %73 : vector<8x8xf32> to vector<8x8xbf16>
    %cst_25 = arith.constant dense<0.000000e+00> : vector<8x8xf32>
    %75 = tpu.matmul %66, %72, %cst_25 {dimension_numbers = #tpu.dot_dimension_numbers<[1], [1], [0], [0], [0, 0, 1, 0], [], []>} : vector<8x8xbf16>, vector<8x8xbf16>, vector<8x8xf32> -> vector<8x8xf32>
    %cst_26 = arith.constant 0.353553385 : f32
    %76 = vector.broadcast %cst_26 : f32 to vector<8x8xf32>
    %77 = arith.mulf %75, %76 : vector<8x8xf32>
    %cst_27 = arith.constant dense<0xFF800000> : vector<8xf32>
    %78 = vector.multi_reduction <maximumf>, %77, %cst_27 [1] : vector<8x8xf32> to vector<8xf32>
    %79 = vector.shape_cast %78 : vector<8xf32> to vector<8x1xf32>
    %80 = vector.broadcast %79 : vector<8x1xf32> to vector<8x8xf32>
    %81 = arith.subf %77, %80 : vector<8x8xf32>
    %82 = math.exp %81 : vector<8x8xf32>
    %cst_28 = arith.constant dense<0.000000e+00> : vector<8xf32>
    %83 = vector.multi_reduction <add>, %82, %cst_28 [1] : vector<8x8xf32> to vector<8xf32>
    %84 = vector.shape_cast %83 : vector<8xf32> to vector<8x1xf32>
    %85 = tpu.reciprocal %84 {approx = true} : vector<8x1xf32> -> vector<8x1xf32>
    %86 = vector.broadcast %85 : vector<8x1xf32> to vector<8x8xf32>
    %87 = arith.mulf %82, %86 : vector<8x8xf32>
    %88 = arith.truncf %87 : vector<8x8xf32> to vector<8x8xbf16>
    %cst_29 = arith.constant dense<0.000000e+00> : vector<8x8xf32>
    %89 = tpu.matmul %88, %74, %cst_29 {dimension_numbers = #tpu.dot_dimension_numbers<[1], [0], [0], [1], [0, 0, 1, 1], [], []>} : vector<8x8xbf16>, vector<8x8xbf16>, vector<8x8xf32> -> vector<8x8xf32>
    %90 = arith.truncf %89 : vector<8x8xf32> to vector<8x8xbf16>
    %c0_30 = arith.constant 0 : index
    %c8 = arith.constant 8 : index
    %91 = vector.load %arg15[%c0_30, %c8] : memref<8x32xbf16, #tpu.memory_space<vmem>>, vector<8x8xbf16>
    tpu.vector_store %arg15[%c0_30, %c8], %90 {strides = array<i32>} : memref<8x32xbf16, #tpu.memory_space<vmem>>, vector<8x8xbf16>,
    %92 = vector.extract_strided_slice %27 {offsets = [0, 16], sizes = [8, 8], strides = [1, 1]} : vector<8x160xf32> to vector<8x8xf32>
    %93 = arith.mulf %92, %28 : vector<8x8xf32>
    %94 = vector.extract_strided_slice %27 {offsets = [0, 48], sizes = [8, 8], strides = [1, 1]} : vector<8x160xf32> to vector<8x8xf32>
    %95 = arith.mulf %94, %29 : vector<8x8xf32>
    %96 = arith.addf %93, %95 : vector<8x8xf32>
    %97 = arith.truncf %96 : vector<8x8xf32> to vector<8x8xbf16>
    %98 = vector.extract_strided_slice %27 {offsets = [0, 80], sizes = [8, 8], strides = [1, 1]} : vector<8x160xf32> to vector<8x8xf32>
    %99 = arith.mulf %98, %28 : vector<8x8xf32>
    %100 = vector.extract_strided_slice %27 {offsets = [0, 112], sizes = [8, 8], strides = [1, 1]} : vector<8x160xf32> to vector<8x8xf32>
    %101 = arith.mulf %100, %29 : vector<8x8xf32>
    %102 = arith.addf %99, %101 : vector<8x8xf32>
    %103 = arith.truncf %102 : vector<8x8xf32> to vector<8x8xbf16>
    %104 = vector.extract_strided_slice %27 {offsets = [0, 144], sizes = [8, 8], strides = [1, 1]} : vector<8x160xf32> to vector<8x8xf32>
    %105 = arith.truncf %104 : vector<8x8xf32> to vector<8x8xbf16>
    %cst_31 = arith.constant dense<0.000000e+00> : vector<8x8xf32>
    %106 = tpu.matmul %97, %103, %cst_31 {dimension_numbers = #tpu.dot_dimension_numbers<[1], [1], [0], [0], [0, 0, 1, 0], [], []>} : vector<8x8xbf16>, vector<8x8xbf16>, vector<8x8xf32> -> vector<8x8xf32>
    %cst_32 = arith.constant 0.353553385 : f32
    %107 = vector.broadcast %cst_32 : f32 to vector<8x8xf32>
    %108 = arith.mulf %106, %107 : vector<8x8xf32>
    %cst_33 = arith.constant dense<0xFF800000> : vector<8xf32>
    %109 = vector.multi_reduction <maximumf>, %108, %cst_33 [1] : vector<8x8xf32> to vector<8xf32>
    %110 = vector.shape_cast %109 : vector<8xf32> to vector<8x1xf32>
    %111 = vector.broadcast %110 : vector<8x1xf32> to vector<8x8xf32>
    %112 = arith.subf %108, %111 : vector<8x8xf32>
    %113 = math.exp %112 : vector<8x8xf32>
    %cst_34 = arith.constant dense<0.000000e+00> : vector<8xf32>
    %114 = vector.multi_reduction <add>, %113, %cst_34 [1] : vector<8x8xf32> to vector<8xf32>
    %115 = vector.shape_cast %114 : vector<8xf32> to vector<8x1xf32>
    %116 = tpu.reciprocal %115 {approx = true} : vector<8x1xf32> -> vector<8x1xf32>
    %117 = vector.broadcast %116 : vector<8x1xf32> to vector<8x8xf32>
    %118 = arith.mulf %113, %117 : vector<8x8xf32>
    %119 = arith.truncf %118 : vector<8x8xf32> to vector<8x8xbf16>
    %cst_35 = arith.constant dense<0.000000e+00> : vector<8x8xf32>
    %120 = tpu.matmul %119, %105, %cst_35 {dimension_numbers = #tpu.dot_dimension_numbers<[1], [0], [0], [1], [0, 0, 1, 1], [], []>} : vector<8x8xbf16>, vector<8x8xbf16>, vector<8x8xf32> -> vector<8x8xf32>
    %121 = arith.truncf %120 : vector<8x8xf32> to vector<8x8xbf16>
    %c0_36 = arith.constant 0 : index
    %c16 = arith.constant 16 : index
    %122 = vector.load %arg15[%c0_36, %c16] : memref<8x32xbf16, #tpu.memory_space<vmem>>, vector<8x8xbf16>
    tpu.vector_store %arg15[%c0_36, %c16], %121 {strides = array<i32>} : memref<8x32xbf16, #tpu.memory_space<vmem>>, vector<8x8xbf16>,
    %123 = vector.extract_strided_slice %27 {offsets = [0, 24], sizes = [8, 8], strides = [1, 1]} : vector<8x160xf32> to vector<8x8xf32>
    %124 = arith.mulf %123, %28 : vector<8x8xf32>
    %125 = vector.extract_strided_slice %27 {offsets = [0, 56], sizes = [8, 8], strides = [1, 1]} : vector<8x160xf32> to vector<8x8xf32>
    %126 = arith.mulf %125, %29 : vector<8x8xf32>
    %127 = arith.addf %124, %126 : vector<8x8xf32>
    %128 = arith.truncf %127 : vector<8x8xf32> to vector<8x8xbf16>
    %129 = vector.extract_strided_slice %27 {offsets = [0, 88], sizes = [8, 8], strides = [1, 1]} : vector<8x160xf32> to vector<8x8xf32>
    %130 = arith.mulf %129, %28 : vector<8x8xf32>
    %131 = vector.extract_strided_slice %27 {offsets = [0, 120], sizes = [8, 8], strides = [1, 1]} : vector<8x160xf32> to vector<8x8xf32>
    %132 = arith.mulf %131, %29 : vector<8x8xf32>
    %133 = arith.addf %130, %132 : vector<8x8xf32>
    %134 = arith.truncf %133 : vector<8x8xf32> to vector<8x8xbf16>
    %135 = vector.extract_strided_slice %27 {offsets = [0, 152], sizes = [8, 8], strides = [1, 1]} : vector<8x160xf32> to vector<8x8xf32>
    %136 = arith.truncf %135 : vector<8x8xf32> to vector<8x8xbf16>
    %cst_37 = arith.constant dense<0.000000e+00> : vector<8x8xf32>
    %137 = tpu.matmul %128, %134, %cst_37 {dimension_numbers = #tpu.dot_dimension_numbers<[1], [1], [0], [0], [0, 0, 1, 0], [], []>} : vector<8x8xbf16>, vector<8x8xbf16>, vector<8x8xf32> -> vector<8x8xf32>
    %cst_38 = arith.constant 0.353553385 : f32
    %138 = vector.broadcast %cst_38 : f32 to vector<8x8xf32>
    %139 = arith.mulf %137, %138 : vector<8x8xf32>
    %cst_39 = arith.constant dense<0xFF800000> : vector<8xf32>
    %140 = vector.multi_reduction <maximumf>, %139, %cst_39 [1] : vector<8x8xf32> to vector<8xf32>
    %141 = vector.shape_cast %140 : vector<8xf32> to vector<8x1xf32>
    %142 = vector.broadcast %141 : vector<8x1xf32> to vector<8x8xf32>
    %143 = arith.subf %139, %142 : vector<8x8xf32>
    %144 = math.exp %143 : vector<8x8xf32>
    %cst_40 = arith.constant dense<0.000000e+00> : vector<8xf32>
    %145 = vector.multi_reduction <add>, %144, %cst_40 [1] : vector<8x8xf32> to vector<8xf32>
    %146 = vector.shape_cast %145 : vector<8xf32> to vector<8x1xf32>
    %147 = tpu.reciprocal %146 {approx = true} : vector<8x1xf32> -> vector<8x1xf32>
    %148 = vector.broadcast %147 : vector<8x1xf32> to vector<8x8xf32>
    %149 = arith.mulf %144, %148 : vector<8x8xf32>
    %150 = arith.truncf %149 : vector<8x8xf32> to vector<8x8xbf16>
    %cst_41 = arith.constant dense<0.000000e+00> : vector<8x8xf32>
    %151 = tpu.matmul %150, %136, %cst_41 {dimension_numbers = #tpu.dot_dimension_numbers<[1], [0], [0], [1], [0, 0, 1, 1], [], []>} : vector<8x8xbf16>, vector<8x8xbf16>, vector<8x8xf32> -> vector<8x8xf32>
    %152 = arith.truncf %151 : vector<8x8xf32> to vector<8x8xbf16>
    %c0_42 = arith.constant 0 : index
    %c24 = arith.constant 24 : index
    %153 = vector.load %arg15[%c0_42, %c24] : memref<8x32xbf16, #tpu.memory_space<vmem>>, vector<8x8xbf16>
    tpu.vector_store %arg15[%c0_42, %c24], %152 {strides = array<i32>} : memref<8x32xbf16, #tpu.memory_space<vmem>>, vector<8x8xbf16>,
    %c0_43 = arith.constant 0 : index
    %c0_44 = arith.constant 0 : index
    %154 = vector.load %arg15[%c0_43, %c0_44] : memref<8x32xbf16, #tpu.memory_space<vmem>>, vector<8x32xbf16>
    %c0_45 = arith.constant 0 : index
    %c0_46 = arith.constant 0 : index
    %155 = vector.load %arg7[%c0_45, %c0_46] : memref<32x32xbf16, #tpu.memory_space<vmem>>, vector<32x32xbf16>
    %cst_47 = arith.constant dense<0.000000e+00> : vector<8x32xf32>
    %156 = tpu.matmul %154, %155, %cst_47 {dimension_numbers = #tpu.dot_dimension_numbers<[1], [0], [0], [1], [0, 0, 1, 1], [], []>} : vector<8x32xbf16>, vector<32x32xbf16>, vector<8x32xf32> -> vector<8x32xf32>
    %c0_48 = arith.constant 0 : index
    %c0_49 = arith.constant 0 : index
    %157 = vector.load %arg8[%c0_48, %c0_49] : memref<1x32xf32, #tpu.memory_space<vmem>>, vector<1x32xf32>
    %158 = vector.broadcast %157 : vector<1x32xf32> to vector<8x32xf32>
    %159 = arith.addf %156, %158 : vector<8x32xf32>
    %160 = vector.broadcast %3 : vector<8x1xf32> to vector<8x32xf32>
    %161 = arith.mulf %159, %160 : vector<8x32xf32>
    %162 = arith.addf %1, %161 : vector<8x32xf32>
    %cst_50 = arith.constant dense<0.000000e+00> : vector<8xf32>
    %163 = vector.multi_reduction <add>, %162, %cst_50 [1] : vector<8x32xf32> to vector<8xf32>
    %164 = vector.shape_cast %163 : vector<8xf32> to vector<8x1xf32>
    %cst_51 = arith.constant 3.200000e+01 : f32
    %165 = vector.broadcast %cst_51 : f32 to vector<8x1xf32>
    %166 = arith.divf %164, %165 : vector<8x1xf32>
    %167 = vector.broadcast %166 : vector<8x1xf32> to vector<8x32xf32>
    %168 = arith.subf %162, %167 : vector<8x32xf32>
    %169 = arith.mulf %168, %168 : vector<8x32xf32>
    %cst_52 = arith.constant dense<0.000000e+00> : vector<8xf32>
    %170 = vector.multi_reduction <add>, %169, %cst_52 [1] : vector<8x32xf32> to vector<8xf32>
    %171 = vector.shape_cast %170 : vector<8xf32> to vector<8x1xf32>
    %cst_53 = arith.constant 3.200000e+01 : f32
    %172 = vector.broadcast %cst_53 : f32 to vector<8x1xf32>
    %173 = arith.divf %171, %172 : vector<8x1xf32>
    %174 = vector.broadcast %166 : vector<8x1xf32> to vector<8x32xf32>
    %175 = arith.subf %162, %174 : vector<8x32xf32>
    %cst_54 = arith.constant 9.99999974E-6 : f32
    %176 = vector.broadcast %cst_54 : f32 to vector<8x1xf32>
    %177 = arith.addf %173, %176 : vector<8x1xf32>
    %178 = math.rsqrt %177 : vector<8x1xf32>
    %179 = vector.broadcast %178 : vector<8x1xf32> to vector<8x32xf32>
    %180 = arith.mulf %175, %179 : vector<8x32xf32>
    %181 = arith.truncf %180 : vector<8x32xf32> to vector<8x32xbf16>
    %cst_55 = arith.constant 0.000000e+00 : f32
    %182 = vector.broadcast %cst_55 : f32 to vector<8x32xf32>
    %c0_56 = arith.constant 0 : index
    %c0_57 = arith.constant 0 : index
    %183 = vector.load %arg9[%c0_56, %c0_57] : memref<32x128xbf16, #tpu.memory_space<vmem>>, vector<32x128xbf16>
    %cst_58 = arith.constant dense<0.000000e+00> : vector<8x128xf32>
    %184 = tpu.matmul %181, %183, %cst_58 {dimension_numbers = #tpu.dot_dimension_numbers<[1], [0], [0], [1], [0, 0, 1, 1], [], []>} : vector<8x32xbf16>, vector<32x128xbf16>, vector<8x128xf32> -> vector<8x128xf32>
    %c0_59 = arith.constant 0 : index
    %c0_60 = arith.constant 0 : index
    %185 = vector.load %arg10[%c0_59, %c0_60] : memref<1x128xf32, #tpu.memory_space<vmem>>, vector<1x128xf32>
    %186 = vector.broadcast %185 : vector<1x128xf32> to vector<8x128xf32>
    %187 = arith.addf %184, %186 : vector<8x128xf32>
    %188 = vector.broadcast %3 : vector<8x1xf32> to vector<8x128xf32>
    %189 = arith.mulf %187, %188 : vector<8x128xf32>
    %cst_61 = arith.constant 5.000000e-01 : f32
    %190 = vector.broadcast %cst_61 : f32 to vector<8x128xf32>
    %191 = arith.mulf %190, %189 : vector<8x128xf32>
    %cst_62 = arith.constant 0.707106769 : f32
    %192 = vector.broadcast %cst_62 : f32 to vector<8x128xf32>
    %193 = arith.mulf %189, %192 : vector<8x128xf32>
    %cst_63 = arith.constant 0.000000e+00 : f32
    %194 = vector.broadcast %cst_63 : f32 to vector<8x128xf32>
    %195 = arith.cmpf oge, %193, %194 : vector<8x128xf32>
    %cst_64 = arith.constant 1.000000e+00 : f32
    %cst_65 = arith.constant -1.000000e+00 : f32
    %196 = vector.broadcast %cst_64 : f32 to vector<8x128xf32>
    %197 = vector.broadcast %cst_65 : f32 to vector<8x128xf32>
    %198 = arith.select %195, %196, %197 : vector<8x128xi1>, vector<8x128xf32>
    %199 = math.absf %193 : vector<8x128xf32>
    %cst_66 = arith.constant 0.327591091 : f32
    %200 = vector.broadcast %cst_66 : f32 to vector<8x128xf32>
    %201 = arith.mulf %200, %199 : vector<8x128xf32>
    %cst_67 = arith.constant 1.000000e+00 : f32
    %202 = vector.broadcast %cst_67 : f32 to vector<8x128xf32>
    %203 = arith.addf %202, %201 : vector<8x128xf32>
    %cst_68 = arith.constant 1.000000e+00 : f32
    %204 = vector.broadcast %cst_68 : f32 to vector<8x128xf32>
    %205 = arith.divf %204, %203 : vector<8x128xf32>
    %cst_69 = arith.constant 1.06140542 : f32
    %206 = vector.broadcast %cst_69 : f32 to vector<8x128xf32>
    %207 = arith.mulf %205, %206 : vector<8x128xf32>
    %cst_70 = arith.constant -1.45315206 : f32
    %208 = vector.broadcast %cst_70 : f32 to vector<8x128xf32>
    %209 = arith.addf %208, %207 : vector<8x128xf32>
    %210 = arith.mulf %205, %209 : vector<8x128xf32>
    %cst_71 = arith.constant 1.42141378 : f32
    %211 = vector.broadcast %cst_71 : f32 to vector<8x128xf32>
    %212 = arith.addf %211, %210 : vector<8x128xf32>
    %213 = arith.mulf %205, %212 : vector<8x128xf32>
    %cst_72 = arith.constant -0.284496725 : f32
    %214 = vector.broadcast %cst_72 : f32 to vector<8x128xf32>
    %215 = arith.addf %214, %213 : vector<8x128xf32>
    %216 = arith.mulf %205, %215 : vector<8x128xf32>
    %cst_73 = arith.constant 0.254829586 : f32
    %217 = vector.broadcast %cst_73 : f32 to vector<8x128xf32>
    %218 = arith.addf %217, %216 : vector<8x128xf32>
    %219 = arith.mulf %205, %218 : vector<8x128xf32>
    %cst_74 = arith.constant 0.000000e+00 : f32
    %220 = vector.broadcast %cst_74 : f32 to vector<8x128xf32>
    %221 = arith.subf %220, %199 : vector<8x128xf32>
    %222 = arith.mulf %221, %199 : vector<8x128xf32>
    %223 = math.exp %222 : vector<8x128xf32>
    %224 = arith.mulf %219, %223 : vector<8x128xf32>
    %cst_75 = arith.constant 1.000000e+00 : f32
    %225 = vector.broadcast %cst_75 : f32 to vector<8x128xf32>
    %226 = arith.subf %225, %224 : vector<8x128xf32>
    %227 = arith.mulf %198, %226 : vector<8x128xf32>
    %cst_76 = arith.constant 1.000000e+00 : f32
    %228 = vector.broadcast %cst_76 : f32 to vector<8x128xf32>
    %229 = arith.addf %228, %227 : vector<8x128xf32>
    %230 = arith.mulf %191, %229 : vector<8x128xf32>
    %231 = arith.truncf %230 : vector<8x128xf32> to vector<8x128xbf16>
    %c0_77 = arith.constant 0 : index
    %c0_78 = arith.constant 0 : index
    %232 = vector.load %arg11[%c0_77, %c0_78] : memref<128x32xbf16, #tpu.memory_space<vmem>>, vector<128x32xbf16>
    %cst_79 = arith.constant dense<0.000000e+00> : vector<8x32xf32>
    %233 = tpu.matmul %231, %232, %cst_79 {dimension_numbers = #tpu.dot_dimension_numbers<[1], [0], [0], [1], [0, 0, 1, 1], [], []>} : vector<8x128xbf16>, vector<128x32xbf16>, vector<8x32xf32> -> vector<8x32xf32>
    %234 = arith.addf %182, %233 : vector<8x32xf32>
    %c0_80 = arith.constant 0 : index
    %c0_81 = arith.constant 0 : index
    %235 = vector.load %arg12[%c0_80, %c0_81] : memref<1x32xf32, #tpu.memory_space<vmem>>, vector<1x32xf32>
    %236 = vector.broadcast %235 : vector<1x32xf32> to vector<8x32xf32>
    %237 = arith.addf %234, %236 : vector<8x32xf32>
    %238 = vector.broadcast %3 : vector<8x1xf32> to vector<8x32xf32>
    %239 = arith.mulf %237, %238 : vector<8x32xf32>
    %240 = arith.addf %162, %239 : vector<8x32xf32>
    %c0_82 = arith.constant 0 : index
    %c0_83 = arith.constant 0 : index
    %c0_84 = arith.constant 0 : index
    %241 = vector.load %arg13[%c0_82, %c0_83, %c0_84] : memref<1x8x32xf32, #tpu.memory_space<vmem>>, vector<1x8x32xf32>
    %242 = vector.shape_cast %241 : vector<1x8x32xf32> to vector<8x32xf32>
    %243 = vector.shape_cast %240 : vector<8x32xf32> to vector<1x8x32xf32>
    tpu.vector_store %arg13[%c0_82, %c0_83, %c0_84], %243 {strides = array<i32>} : memref<1x8x32xf32, #tpu.memory_space<vmem>>, vector<1x8x32xf32>,
    %c0_85 = arith.constant 0 : index
    %c0_86 = arith.constant 0 : index
    %c0_87 = arith.constant 0 : index
    %244 = vector.load %arg14[%c0_85, %c0_86, %c0_87] : memref<1x8x32xf32, #tpu.memory_space<vmem>>, vector<1x8x32xf32>
    %245 = vector.shape_cast %244 : vector<1x8x32xf32> to vector<8x32xf32>
    %246 = vector.shape_cast %239 : vector<8x32xf32> to vector<1x8x32xf32>
    tpu.vector_store %arg14[%c0_85, %c0_86, %c0_87], %246 {strides = array<i32>} : memref<1x8x32xf32, #tpu.memory_space<vmem>>, vector<1x8x32xf32>,
    return
  }
  func.func @transform_0(%arg0: i32) -> (i32, i32, i32) {
    %c0_i32 = arith.constant 0 : i32
    %c0_i32_0 = arith.constant 0 : i32
    %c0_i32_1 = arith.constant 0 : i32
    return %arg0, %c0_i32, %c0_i32_0 : i32, i32, i32
  }
  func.func @transform_1(%arg0: i32) -> (i32, i32, i32) {
    %c0_i32 = arith.constant 0 : i32
    %c0_i32_0 = arith.constant 0 : i32
    %c0_i32_1 = arith.constant 0 : i32
    return %arg0, %c0_i32, %c0_i32_0 : i32, i32, i32
  }
  func.func @transform_2(%arg0: i32) -> (i32, i32) {
    %c0_i32 = arith.constant 0 : i32
    %c0_i32_0 = arith.constant 0 : i32
    %c0_i32_1 = arith.constant 0 : i32
    return %c0_i32, %c0_i32_0 : i32, i32
  }
  func.func @transform_3(%arg0: i32) -> (i32, i32) {
    %c0_i32 = arith.constant 0 : i32
    %c0_i32_0 = arith.constant 0 : i32
    %c0_i32_1 = arith.constant 0 : i32
    return %c0_i32, %c0_i32_0 : i32, i32
  }
  func.func @transform_4(%arg0: i32) -> (i32, i32) {
    %c0_i32 = arith.constant 0 : i32
    %c0_i32_0 = arith.constant 0 : i32
    %c0_i32_1 = arith.constant 0 : i32
    return %c0_i32, %c0_i32_0 : i32, i32
  }
  func.func @transform_5(%arg0: i32) -> (i32, i32) {
    %c0_i32 = arith.constant 0 : i32
    %c0_i32_0 = arith.constant 0 : i32
    %c0_i32_1 = arith.constant 0 : i32
    return %c0_i32, %c0_i32_0 : i32, i32
  }
  func.func @transform_6(%arg0: i32) -> (i32, i32) {
    %c0_i32 = arith.constant 0 : i32
    %c0_i32_0 = arith.constant 0 : i32
    %c0_i32_1 = arith.constant 0 : i32
    return %c0_i32, %c0_i32_0 : i32, i32
  }
  func.func @transform_7(%arg0: i32) -> (i32, i32) {
    %c0_i32 = arith.constant 0 : i32
    %c0_i32_0 = arith.constant 0 : i32
    %c0_i32_1 = arith.constant 0 : i32
    return %c0_i32, %c0_i32_0 : i32, i32
  }
  func.func @transform_8(%arg0: i32) -> (i32, i32) {
    %c0_i32 = arith.constant 0 : i32
    %c0_i32_0 = arith.constant 0 : i32
    %c0_i32_1 = arith.constant 0 : i32
    return %c0_i32, %c0_i32_0 : i32, i32
  }
  func.func @transform_9(%arg0: i32) -> (i32, i32) {
    %c0_i32 = arith.constant 0 : i32
    %c0_i32_0 = arith.constant 0 : i32
    %c0_i32_1 = arith.constant 0 : i32
    return %c0_i32, %c0_i32_0 : i32, i32
  }
  func.func @transform_10(%arg0: i32) -> (i32, i32) {
    %c0_i32 = arith.constant 0 : i32
    %c0_i32_0 = arith.constant 0 : i32
    %c0_i32_1 = arith.constant 0 : i32
    return %c0_i32, %c0_i32_0 : i32, i32
  }
  func.func @transform_11(%arg0: i32) -> (i32, i32) {
    %c0_i32 = arith.constant 0 : i32
    %c0_i32_0 = arith.constant 0 : i32
    %c0_i32_1 = arith.constant 0 : i32
    return %c0_i32, %c0_i32_0 : i32, i32
  }
  func.func @transform_12(%arg0: i32) -> (i32, i32, i32) {
    %c0_i32 = arith.constant 0 : i32
    %c0_i32_0 = arith.constant 0 : i32
    %c0_i32_1 = arith.constant 0 : i32
    return %arg0, %c0_i32, %c0_i32_0 : i32, i32, i32
  }
  func.func @transform_13(%arg0: i32) -> (i32, i32, i32) {
    %c0_i32 = arith.constant 0 : i32
    %c0_i32_0 = arith.constant 0 : i32
    %c0_i32_1 = arith.constant 0 : i32
    return %arg0, %c0_i32, %c0_i32_0 : i32, i32, i32
  }
}

</mosaic_0001>

<llo_original>
// kernel: tpu_custom_call.1
$region0: #{tpu_custom_call.1}
  #allocation0 [shape = 'u32[]', space=smem, size = 0x4, offset = 0x4, fixed_abs, tag = 'smem constant byte address 0x4 - core index']
  #allocation1 [shape = 'u32[144,128]{1,0:T(1,128)}', space=vmem, size = 0x12000, scoped, tag = 'internal scratch']
  #allocation2 [shape = 'bf16[8,32]{1,0:T(8,128)(2,1)}', space=vmem, size = 0x800, scoped, tag = 'scratch operand']
  %s0 = inlined_call_operand.vmem [shape: f32[2,8,32], index: 0, kind: input, shape index: {}]
  %s1 = inlined_call_operand.vmem [shape: f32[2,8,1], index: 1, kind: input, shape index: {}]
  %s2 = inlined_call_operand.vmem [shape: f32[8,8], index: 2, kind: input, shape index: {}]
  %s3 = inlined_call_operand.vmem [shape: f32[8,8], index: 3, kind: input, shape index: {}]
  %s4 = inlined_call_operand.vmem [shape: bf16[32,160], index: 4, kind: input, shape index: {}]
  %s5 = inlined_call_operand.hbm [shape: f32[1,160], index: 5, kind: input, shape index: {}]
  %s6 = inlined_call_operand.vmem [shape: bf16[32,32], index: 6, kind: input, shape index: {}]
  %s7 = inlined_call_operand.hbm [shape: f32[1,32], index: 7, kind: input, shape index: {}]
  %s8 = inlined_call_operand.vmem [shape: bf16[32,128], index: 8, kind: input, shape index: {}]
  %s9 = inlined_call_operand.vmem [shape: f32[1,128], index: 9, kind: input, shape index: {}]
  %s10 = inlined_call_operand.vmem [shape: bf16[128,32], index: 10, kind: input, shape index: {}]
  %s11 = inlined_call_operand.vmem [shape: f32[1,32], index: 11, kind: input, shape index: {}]
  %s12 = inlined_call_operand.hbm [shape: f32[2,8,32], index: 12, kind: output, shape index: {0}]
  %s13 = inlined_call_operand.hbm [shape: f32[2,8,32], index: 13, kind: output, shape index: {1}]
  %14 = xla_tuple %s12, %s13
  %s15 = sld [smem:[#allocation0]]
  $region97: #{tpu_custom_call.1} parent=0
    _
  %s17 = ssub.s32 1, %s15
  %s18 = scalar_select 0, %s17, %s15
  $region1: #{tpu_custom_call.1} parent=0
    #allocation3 [shape = 'u8[1024]{0}', space=vmem, size = 0x400, scoped, tag = 'input window, operand 5, single buffered']
    #allocation4 [shape = 's32[2]{0}', space=sflag, size = 0x8, scoped, tag = 'scoped memory for tpu_custom_call.1']
    #allocation5 [shape = 's32[2]{0}', space=sflag, size = 0x8, scoped, tag = 'scoped memory for tpu_custom_call.1']
    #allocation6 [shape = 'u8[512]{0}', space=vmem, size = 0x400, scoped, tag = 'input window, operand 7, single buffered']
    #allocation7 [shape = 's32[1]{0}', space=sflag, size = 0x4, scoped, tag = 'scoped memory for tpu_custom_call.1']
    #allocation8 [shape = 'u8[8192]{0}', space=vmem, size = 0x2000, scoped, tag = 'output window, operand 0']
    #allocation9 [shape = 'u8[8192]{0}', space=vmem, size = 0x2000, scoped, tag = 'output window, operand 1']
    #allocation10 [shape = 's32[2]{0}', space=sflag, size = 0x8, scoped, tag = 'scoped memory for tpu_custom_call.1']
    %19 = vsyncpa [#allocation4], 0
    %20 = vsyncpa [#allocation7], 0
    %21 = vsyncpa [#allocation5], 0
    %s22 = scalar_lea.sflag [#allocation5], 1
    %23 = vsyncpa %s22, 0
    %24 = vsyncpa [#allocation10], 0
    %s25 = scalar_lea.sflag [#allocation10], 1
    %26 = vsyncpa %s25, 0
    loop: start=0, step=1, limit=4
    $region2: #{tpu_custom_call.1} parent=1 // loop_pre_header
      _
    $region3: #{tpu_custom_call.1} parent=1 // loop_header
      %s28 = sphi 0, %s32
      %p29 = scmp.ge.s32.totalorder %s28, 4
      %s38 = sphi 0, %s40
      %s41 = sphi 0, %s38
      %s42 = sphi 0, %s41
      %s58 = sphi 0, %s42
      %s64 = sphi 0, %s66
      %s67 = sphi 0, %s64
      %s68 = sphi 0, %s67
      %s84 = sphi 0, %s68
      %s88 = sphi 0, %s88
      %s90 = sphi 0, %s88
      %s91 = sphi 0, %s90
      %s105 = sphi 0, %s91
      %s109 = sphi 0, %s109
      %s111 = sphi 0, %s109
      %s112 = sphi 0, %s111
      %s126 = sphi 0, %s112
      %s130 = sphi 0, %s130
      %s132 = sphi 0, %s130
      %s133 = sphi 0, %s132
      %s147 = sphi 0, %s133
      %s151 = sphi 0, %s151
      %s153 = sphi 0, %s151
      %s154 = sphi 0, %s153
      %s168 = sphi 0, %s154
      %s172 = sphi 0, %s172
      %s174 = sphi 0, %s172
      %s175 = sphi 0, %s174
      %s189 = sphi 0, %s175
      %s193 = sphi 0, %s193
      %s195 = sphi 0, %s193
      %s196 = sphi 0, %s195
      %s210 = sphi 0, %s196
      %s214 = sphi 0, %s214
      %s216 = sphi 0, %s214
      %s217 = sphi 0, %s216
      %s231 = sphi 0, %s217
      %s235 = sphi 0, %s235
      %s237 = sphi 0, %s235
      %s238 = sphi 0, %s237
      %s252 = sphi 0, %s238
      %s256 = sphi 0, %s256
      %s258 = sphi 0, %s256
      %s259 = sphi 0, %s258
      %s273 = sphi 0, %s259
      %s277 = sphi 0, %s277
      %s279 = sphi 0, %s277
      %s280 = sphi 0, %s279
      %s294 = sphi 0, %s280
      %s300 = sphi 0, %s302
      %s303 = sphi 0, %s300
      %s304 = sphi 0, %s303
      %s320 = sphi 0, %s304
      %s326 = sphi 0, %s328
      %s329 = sphi 0, %s326
      %s330 = sphi 0, %s329
      %s346 = sphi 0, %s330
    $region4: #{tpu_custom_call.1} parent=1 // loop_header_branch
      %31 = sbr.rel (%p29) target = $region8
    $region5: #{tpu_custom_call.1} parent=1 // loop_body
      %s33 = ssub.s32 %s28, 1
      %s34 = ssub.s32 %s28, 2
      %s35 = sadd.s32 %s28, 1
      %s36 = ssub.s32 %s28, %s35
      %p37 = scmp.eq.s32.totalorder %s36, 0
      %s39 = sadd.s32 %s38, 1
      %s40 = scalar_select %p37, %s38, %s39
      %p43 = pneg %p37
      %p44 = scmp.eq.s32.totalorder %s28, 1
      %p45 = por %p43, %p44
      %p46 = scmp.ne.s32.totalorder %s38, %s41
      %p47 = scmp.eq.s32.totalorder %s28, 0
      %p48 = por %p46, %p47
      %p49 = scmp.ne.s32.totalorder %s38, %s41
      %p50 = scmp.eq.s32.totalorder %s33, 1
      %p51 = por %p49, %p50
      %p52 = scmp.ne.s32.totalorder %s41, %s42
      %p53 = scmp.eq.s32.totalorder %s33, 0
      %p54 = por %p52, %p53
      %p55 = scmp.ne.s32.totalorder %s41, %s42
      %p56 = scmp.eq.s32.totalorder %s34, 1
      %p57 = por %p55, %p56
      %p59 = scmp.ne.s32.totalorder %s42, %s58
      %p60 = scmp.eq.s32.totalorder %s34, 0
      %p61 = por %p59, %p60
      %s62 = ssub.s32 %s28, %s35
      %p63 = scmp.eq.s32.totalorder %s62, 0
      %s65 = sadd.s32 %s64, 1
      %s66 = scalar_select %p63, %s64, %s65
      %p69 = pneg %p63
      %p70 = scmp.eq.s32.totalorder %s28, 1
      %p71 = por %p69, %p70
      %p72 = scmp.ne.s32.totalorder %s64, %s67
      %p73 = scmp.eq.s32.totalorder %s28, 0
      %p74 = por %p72, %p73
      %p75 = scmp.ne.s32.totalorder %s64, %s67
      %p76 = scmp.eq.s32.totalorder %s33, 1
      %p77 = por %p75, %p76
      %p78 = scmp.ne.s32.totalorder %s67, %s68
      %p79 = scmp.eq.s32.totalorder %s33, 0
      %p80 = por %p78, %p79
      %p81 = scmp.ne.s32.totalorder %s67, %s68
      %p82 = scmp.eq.s32.totalorder %s34, 1
      %p83 = por %p81, %p82
      %p85 = scmp.ne.s32.totalorder %s68, %s84
      %p86 = scmp.eq.s32.totalorder %s34, 0
      %p87 = por %p85, %p86
      %s89 = sadd.s32 %s88, 1
      %p92 = scmp.eq.s32.totalorder %s28, 1
      %p93 = scmp.ne.s32.totalorder %s88, %s90
      %p94 = scmp.eq.s32.totalorder %s28, 0
      %p95 = por %p93, %p94
      %p96 = scmp.ne.s32.totalorder %s88, %s90
      %p97 = scmp.eq.s32.totalorder %s33, 1
      %p98 = por %p96, %p97
      %p99 = scmp.ne.s32.totalorder %s90, %s91
      %p100 = scmp.eq.s32.totalorder %s33, 0
      %p101 = por %p99, %p100
      %p102 = scmp.ne.s32.totalorder %s90, %s91
      %p103 = scmp.eq.s32.totalorder %s34, 1
      %p104 = por %p102, %p103
      %p106 = scmp.ne.s32.totalorder %s91, %s105
      %p107 = scmp.eq.s32.totalorder %s34, 0
      %p108 = por %p106, %p107
      %s110 = sadd.s32 %s109, 1
      %p113 = scmp.eq.s32.totalorder %s28, 1
      %p114 = scmp.ne.s32.totalorder %s109, %s111
      %p115 = scmp.eq.s32.totalorder %s28, 0
      %p116 = por %p114, %p115
      %p117 = scmp.ne.s32.totalorder %s109, %s111
      %p118 = scmp.eq.s32.totalorder %s33, 1
      %p119 = por %p117, %p118
      %p120 = scmp.ne.s32.totalorder %s111, %s112
      %p121 = scmp.eq.s32.totalorder %s33, 0
      %p122 = por %p120, %p121
      %p123 = scmp.ne.s32.totalorder %s111, %s112
      %p124 = scmp.eq.s32.totalorder %s34, 1
      %p125 = por %p123, %p124
      %p127 = scmp.ne.s32.totalorder %s112, %s126
      %p128 = scmp.eq.s32.totalorder %s34, 0
      %p129 = por %p127, %p128
      %s131 = sadd.s32 %s130, 1
      %p134 = scmp.eq.s32.totalorder %s28, 1
      %p135 = scmp.ne.s32.totalorder %s130, %s132
      %p136 = scmp.eq.s32.totalorder %s28, 0
      %p137 = por %p135, %p136
      %p138 = scmp.ne.s32.totalorder %s130, %s132
      %p139 = scmp.eq.s32.totalorder %s33, 1
      %p140 = por %p138, %p139
      %p141 = scmp.ne.s32.totalorder %s132, %s133
      %p142 = scmp.eq.s32.totalorder %s33, 0
      %p143 = por %p141, %p142
      %p144 = scmp.ne.s32.totalorder %s132, %s133
      %p145 = scmp.eq.s32.totalorder %s34, 1
      %p146 = por %p144, %p145
      %p148 = scmp.ne.s32.totalorder %s133, %s147
      %p149 = scmp.eq.s32.totalorder %s34, 0
      %p150 = por %p148, %p149
      %s152 = sadd.s32 %s151, 1
      %p155 = scmp.eq.s32.totalorder %s28, 1
      %p156 = scmp.ne.s32.totalorder %s151, %s153
      %p157 = scmp.eq.s32.totalorder %s28, 0
      %p158 = por %p156, %p157
      %p159 = scmp.ne.s32.totalorder %s151, %s153
      %p160 = scmp.eq.s32.totalorder %s33, 1
      %p161 = por %p159, %p160
      %p162 = scmp.ne.s32.totalorder %s153, %s154
      %p163 = scmp.eq.s32.totalorder %s33, 0
      %p164 = por %p162, %p163
      %p165 = scmp.ne.s32.totalorder %s153, %s154
      %p166 = scmp.eq.s32.totalorder %s34, 1
      %p167 = por %p165, %p166
      %p169 = scmp.ne.s32.totalorder %s154, %s168
      %p170 = scmp.eq.s32.totalorder %s34, 0
      %p171 = por %p169, %p170
      %s173 = sadd.s32 %s172, 1
      %p176 = scmp.eq.s32.totalorder %s28, 1
      %p177 = scmp.ne.s32.totalorder %s172, %s174
      %p178 = scmp.eq.s32.totalorder %s28, 0
      %p179 = por %p177, %p178
      %p180 = scmp.ne.s32.totalorder %s172, %s174
      %p181 = scmp.eq.s32.totalorder %s33, 1
      %p182 = por %p180, %p181
      %p183 = scmp.ne.s32.totalorder %s174, %s175
      %p184 = scmp.eq.s32.totalorder %s33, 0
      %p185 = por %p183, %p184
      %p186 = scmp.ne.s32.totalorder %s174, %s175
      %p187 = scmp.eq.s32.totalorder %s34, 1
      %p188 = por %p186, %p187
      %p190 = scmp.ne.s32.totalorder %s175, %s189
      %p191 = scmp.eq.s32.totalorder %s34, 0
      %p192 = por %p190, %p191
      %s194 = sadd.s32 %s193, 1
      %p197 = scmp.eq.s32.totalorder %s28, 1
      %p198 = scmp.ne.s32.totalorder %s193, %s195
      %p199 = scmp.eq.s32.totalorder %s28, 0
      %p200 = por %p198, %p199
      %p201 = scmp.ne.s32.totalorder %s193, %s195
      %p202 = scmp.eq.s32.totalorder %s33, 1
      %p203 = por %p201, %p202
      %p204 = scmp.ne.s32.totalorder %s195, %s196
      %p205 = scmp.eq.s32.totalorder %s33, 0
      %p206 = por %p204, %p205
      %p207 = scmp.ne.s32.totalorder %s195, %s196
      %p208 = scmp.eq.s32.totalorder %s34, 1
      %p209 = por %p207, %p208
      %p211 = scmp.ne.s32.totalorder %s196, %s210
      %p212 = scmp.eq.s32.totalorder %s34, 0
      %p213 = por %p211, %p212
      %s215 = sadd.s32 %s214, 1
      %p218 = scmp.eq.s32.totalorder %s28, 1
      %p219 = scmp.ne.s32.totalorder %s214, %s216
      %p220 = scmp.eq.s32.totalorder %s28, 0
      %p221 = por %p219, %p220
      %p222 = scmp.ne.s32.totalorder %s214, %s216
      %p223 = scmp.eq.s32.totalorder %s33, 1
      %p224 = por %p222, %p223
      %p225 = scmp.ne.s32.totalorder %s216, %s217
      %p226 = scmp.eq.s32.totalorder %s33, 0
      %p227 = por %p225, %p226
      %p228 = scmp.ne.s32.totalorder %s216, %s217
      %p229 = scmp.eq.s32.totalorder %s34, 1
      %p230 = por %p228, %p229
      %p232 = scmp.ne.s32.totalorder %s217, %s231
      %p233 = scmp.eq.s32.totalorder %s34, 0
      %p234 = por %p232, %p233
      %s236 = sadd.s32 %s235, 1
      %p239 = scmp.eq.s32.totalorder %s28, 1
      %p240 = scmp.ne.s32.totalorder %s235, %s237
      %p241 = scmp.eq.s32.totalorder %s28, 0
      %p242 = por %p240, %p241
      %p243 = scmp.ne.s32.totalorder %s235, %s237
      %p244 = scmp.eq.s32.totalorder %s33, 1
      %p245 = por %p243, %p244
      %p246 = scmp.ne.s32.totalorder %s237, %s238
      %p247 = scmp.eq.s32.totalorder %s33, 0
      %p248 = por %p246, %p247
      %p249 = scmp.ne.s32.totalorder %s237, %s238
      %p250 = scmp.eq.s32.totalorder %s34, 1
      %p251 = por %p249, %p250
      %p253 = scmp.ne.s32.totalorder %s238, %s252
      %p254 = scmp.eq.s32.totalorder %s34, 0
      %p255 = por %p253, %p254
      %s257 = sadd.s32 %s256, 1
      %p260 = scmp.eq.s32.totalorder %s28, 1
      %p261 = scmp.ne.s32.totalorder %s256, %s258
      %p262 = scmp.eq.s32.totalorder %s28, 0
      %p263 = por %p261, %p262
      %p264 = scmp.ne.s32.totalorder %s256, %s258
      %p265 = scmp.eq.s32.totalorder %s33, 1
      %p266 = por %p264, %p265
      %p267 = scmp.ne.s32.totalorder %s258, %s259
      %p268 = scmp.eq.s32.totalorder %s33, 0
      %p269 = por %p267, %p268
      %p270 = scmp.ne.s32.totalorder %s258, %s259
      %p271 = scmp.eq.s32.totalorder %s34, 1
      %p272 = por %p270, %p271
      %p274 = scmp.ne.s32.totalorder %s259, %s273
      %p275 = scmp.eq.s32.totalorder %s34, 0
      %p276 = por %p274, %p275
      %s278 = sadd.s32 %s277, 1
      %p281 = scmp.eq.s32.totalorder %s28, 1
      %p282 = scmp.ne.s32.totalorder %s277, %s279
      %p283 = scmp.eq.s32.totalorder %s28, 0
      %p284 = por %p282, %p283
      %p285 = scmp.ne.s32.totalorder %s277, %s279
      %p286 = scmp.eq.s32.totalorder %s33, 1
      %p287 = por %p285, %p286
      %p288 = scmp.ne.s32.totalorder %s279, %s280
      %p289 = scmp.eq.s32.totalorder %s33, 0
      %p290 = por %p288, %p289
      %p291 = scmp.ne.s32.totalorder %s279, %s280
      %p292 = scmp.eq.s32.totalorder %s34, 1
      %p293 = por %p291, %p292
      %p295 = scmp.ne.s32.totalorder %s280, %s294
      %p296 = scmp.eq.s32.totalorder %s34, 0
      %p297 = por %p295, %p296
      %s298 = ssub.s32 %s28, %s35
      %p299 = scmp.eq.s32.totalorder %s298, 0
      %s301 = sadd.s32 %s300, 1
      %s302 = scalar_select %p299, %s300, %s301
      %p305 = pneg %p299
      %p306 = scmp.eq.s32.totalorder %s28, 1
      %p307 = por %p305, %p306
      %p308 = scmp.ne.s32.totalorder %s300, %s303
      %p309 = scmp.eq.s32.totalorder %s28, 0
      %p310 = por %p308, %p309
      %p311 = scmp.ne.s32.totalorder %s300, %s303
      %p312 = scmp.eq.s32.totalorder %s33, 1
      %p313 = por %p311, %p312
      %p314 = scmp.ne.s32.totalorder %s303, %s304
      %p315 = scmp.eq.s32.totalorder %s33, 0
      %p316 = por %p314, %p315
      %p317 = scmp.ne.s32.totalorder %s303, %s304
      %p318 = scmp.eq.s32.totalorder %s34, 1
      %p319 = por %p317, %p318
      %p321 = scmp.ne.s32.totalorder %s304, %s320
      %p322 = scmp.eq.s32.totalorder %s34, 0
      %p323 = por %p321, %p322
      %s324 = ssub.s32 %s28, %s35
      %p325 = scmp.eq.s32.totalorder %s324, 0
      %s327 = sadd.s32 %s326, 1
      %s328 = scalar_select %p325, %s326, %s327
      %p331 = pneg %p325
      %p332 = scmp.eq.s32.totalorder %s28, 1
      %p333 = por %p331, %p332
      %p334 = scmp.ne.s32.totalorder %s326, %s329
      %p335 = scmp.eq.s32.totalorder %s28, 0
      %p336 = por %p334, %p335
      %p337 = scmp.ne.s32.totalorder %s326, %s329
      %p338 = scmp.eq.s32.totalorder %s33, 1
      %p339 = por %p337, %p338
      %p340 = scmp.ne.s32.totalorder %s329, %s330
      %p341 = scmp.eq.s32.totalorder %s33, 0
      %p342 = por %p340, %p341
      %p343 = scmp.ne.s32.totalorder %s329, %s330
      %p344 = scmp.eq.s32.totalorder %s34, 1
      %p345 = por %p343, %p344
      %p347 = scmp.ne.s32.totalorder %s330, %s346
      %p348 = scmp.eq.s32.totalorder %s34, 0
      %p349 = por %p347, %p348
      %p350 = scmp.le.s32.totalorder 1, %s28
      %p351 = scmp.lt.s32.totalorder %s28, 3
      %p352 = pnand %p350, %p351
      %p353 = pneg %p352
      // Predicated region
      $region9: #{tpu_custom_call.1} parent=5 // pred_check
        _
      $region10: #{tpu_custom_call.1} parent=5 // pred_check_branch
        %355 = sbr.rel (%p352) target = $region12
      $region11: #{tpu_custom_call.1} parent=5 // pred_region
        %s356 = ssub.s32 %s28, 1
        // Predicated region
        $region13: #{tpu_custom_call.1} parent=11 // pred_check
          %p357 = pneg %p101
        $region14: #{tpu_custom_call.1} parent=11 // pred_check_branch
          %359 = sbr.rel (%p357) target = $region16
        $region15: #{tpu_custom_call.1} parent=11 // pred_region
          _
        $region16: #{tpu_custom_call.1} parent=11 // pred_fallthru
          _
        // Predicated region
        $region17: #{tpu_custom_call.1} parent=11 // pred_check
          %p360 = pneg %p122
        $region18: #{tpu_custom_call.1} parent=11 // pred_check_branch
          %362 = sbr.rel (%p360) target = $region20
        $region19: #{tpu_custom_call.1} parent=11 // pred_region
          _
        $region20: #{tpu_custom_call.1} parent=11 // pred_fallthru
          _
        // Predicated region
        $region21: #{tpu_custom_call.1} parent=11 // pred_check
          %p363 = pneg %p143
        $region22: #{tpu_custom_call.1} parent=11 // pred_check_branch
          %365 = sbr.rel (%p363) target = $region24
        $region23: #{tpu_custom_call.1} parent=11 // pred_region
          _
        $region24: #{tpu_custom_call.1} parent=11 // pred_fallthru
          _
        // Predicated region
        $region25: #{tpu_custom_call.1} parent=11 // pred_check
          %p366 = pneg %p164
        $region26: #{tpu_custom_call.1} parent=11 // pred_check_branch
          %368 = sbr.rel (%p366) target = $region28
        $region27: #{tpu_custom_call.1} parent=11 // pred_region
          %s370 = ssub.s32 32, 32
          %371 = vsyncadd [#allocation4], %s370
          %s373 = sshll.u32 [#allocation3], 4
          %s374 = int_to_ptr.vmem [resolvable:$true] %s373
          %376 = dma.hbm_to_vmem [thread:$0]  %s5, 32, %s374, [#allocation4]
        $region28: #{tpu_custom_call.1} parent=11 // pred_fallthru
          _
        // Predicated region
        $region29: #{tpu_custom_call.1} parent=11 // pred_check
          %p377 = pneg %p185
        $region30: #{tpu_custom_call.1} parent=11 // pred_check_branch
          %379 = sbr.rel (%p377) target = $region32
        $region31: #{tpu_custom_call.1} parent=11 // pred_region
          _
        $region32: #{tpu_custom_call.1} parent=11 // pred_fallthru
          _
        // Predicated region
        $region33: #{tpu_custom_call.1} parent=11 // pred_check
          %p380 = pneg %p206
        $region34: #{tpu_custom_call.1} parent=11 // pred_check_branch
          %382 = sbr.rel (%p380) target = $region36
        $region35: #{tpu_custom_call.1} parent=11 // pred_region
          %s384 = ssub.s32 16, 16
          %385 = vsyncadd [#allocation7], %s384
          %s387 = sshll.u32 [#allocation6], 4
          %s388 = int_to_ptr.vmem [resolvable:$true] %s387
          %390 = dma.hbm_to_vmem [thread:$0]  %s7, 16, %s388, [#allocation7]
        $region36: #{tpu_custom_call.1} parent=11 // pred_fallthru
          _
        // Predicated region
        $region37: #{tpu_custom_call.1} parent=11 // pred_check
          %p391 = pneg %p227
        $region38: #{tpu_custom_call.1} parent=11 // pred_check_branch
          %393 = sbr.rel (%p391) target = $region40
        $region39: #{tpu_custom_call.1} parent=11 // pred_region
          _
        $region40: #{tpu_custom_call.1} parent=11 // pred_fallthru
          _
        // Predicated region
        $region41: #{tpu_custom_call.1} parent=11 // pred_check
          %p394 = pneg %p248
        $region42: #{tpu_custom_call.1} parent=11 // pred_check_branch
          %396 = sbr.rel (%p394) target = $region44
        $region43: #{tpu_custom_call.1} parent=11 // pred_region
          _
        $region44: #{tpu_custom_call.1} parent=11 // pred_fallthru
          _
        // Predicated region
        $region45: #{tpu_custom_call.1} parent=11 // pred_check
          %p397 = pneg %p269
        $region46: #{tpu_custom_call.1} parent=11 // pred_check_branch
          %399 = sbr.rel (%p397) target = $region48
        $region47: #{tpu_custom_call.1} parent=11 // pred_region
          _
        $region48: #{tpu_custom_call.1} parent=11 // pred_fallthru
          _
        // Predicated region
        $region49: #{tpu_custom_call.1} parent=11 // pred_check
          %p400 = pneg %p290
        $region50: #{tpu_custom_call.1} parent=11 // pred_check_branch
          %402 = sbr.rel (%p400) target = $region52
        $region51: #{tpu_custom_call.1} parent=11 // pred_region
          _
        $region52: #{tpu_custom_call.1} parent=11 // pred_fallthru
          _
      $region12: #{tpu_custom_call.1} parent=5 // pred_fallthru
        _
      %p403 = scmp.lt.s32.totalorder %s28, 2
      // Predicated region
      $region53: #{tpu_custom_call.1} parent=5 // pred_check
        %p404 = pneg %p403
      $region54: #{tpu_custom_call.1} parent=5 // pred_check_branch
        %406 = sbr.rel (%p404) target = $region56
      $region55: #{tpu_custom_call.1} parent=5 // pred_region
        // Predicated region
        $region57: #{tpu_custom_call.1} parent=55 // pred_check
          %p407 = pneg %p48
        $region58: #{tpu_custom_call.1} parent=55 // pred_check_branch
          %409 = sbr.rel (%p407) target = $region60
        $region59: #{tpu_custom_call.1} parent=55 // pred_region
          %p410 = scmp.lt.s32.totalorder %s28, 1
          %s411 = scalar_select %p410, %s28, 1
          %s412 = smul.addr %s411, 8
          %s413 = scalar_lea.vmem %s0, %s412
        $region60: #{tpu_custom_call.1} parent=55 // pred_fallthru
          _
        // Predicated region
        $region61: #{tpu_custom_call.1} parent=55 // pred_check
          %p414 = pneg %p74
        $region62: #{tpu_custom_call.1} parent=55 // pred_check_branch
          %416 = sbr.rel (%p414) target = $region64
        $region63: #{tpu_custom_call.1} parent=55 // pred_region
          %p417 = scmp.lt.s32.totalorder %s28, 1
          %s418 = scalar_select %p417, %s28, 1
          %s419 = smul.addr %s418, 8
          %s420 = scalar_lea.vmem %s1, %s419
        $region64: #{tpu_custom_call.1} parent=55 // pred_fallthru
          _
      $region56: #{tpu_custom_call.1} parent=5 // pred_fallthru
        _
      %p421 = scmp.le.s32.totalorder 1, %s28
      %p422 = scmp.lt.s32.totalorder %s28, 3
      %p423 = pnand %p421, %p422
      %p424 = pneg %p423
      // Predicated region
      $region65: #{tpu_custom_call.1} parent=5 // pred_check
        _
      $region66: #{tpu_custom_call.1} parent=5 // pred_check_branch
        %426 = sbr.rel (%p423) target = $region68
      $region67: #{tpu_custom_call.1} parent=5 // pred_region
        %s427 = ssub.s32 %s28, 1
        // Predicated region
        $region69: #{tpu_custom_call.1} parent=67 // pred_check
          %p428 = pneg %p164
        $region70: #{tpu_custom_call.1} parent=67 // pred_check_branch
          %430 = sbr.rel (%p428) target = $region72
        $region71: #{tpu_custom_call.1} parent=67 // pred_region
          %431 = dma.done [#allocation4], 32
        $region72: #{tpu_custom_call.1} parent=67 // pred_fallthru
          _
        // Predicated region
        $region73: #{tpu_custom_call.1} parent=67 // pred_check
          %p432 = pneg %p206
        $region74: #{tpu_custom_call.1} parent=67 // pred_check_branch
          %434 = sbr.rel (%p432) target = $region76
        $region75: #{tpu_custom_call.1} parent=67 // pred_region
          %435 = dma.done [#allocation7], 16
        $region76: #{tpu_custom_call.1} parent=67 // pred_fallthru
          _
        %p436 = scmp.lt.s32.totalorder %s33, 1
        %s437 = scalar_select %p436, %s33, 1
        %s438 = smul.addr %s437, 8
        %s439 = scalar_lea.vmem %s0, %s438
        %p440 = pneg %p54
        %p441 = pneg %p51
        %p442 = scmp.lt.s32.totalorder %s33, 1
        %s443 = scalar_select %p442, %s33, 1
        %s444 = smul.addr %s443, 8
        %s445 = scalar_lea.vmem %s1, %s444
        %p446 = pneg %p80
        %p447 = pneg %p77
        %p448 = pneg %p101
        %p449 = pneg %p98
        %p450 = pneg %p122
        %p451 = pneg %p119
        %p452 = pneg %p143
        %p453 = pneg %p140
        %p454 = pneg %p164
        %p455 = pneg %p161
        %p456 = pneg %p185
        %p457 = pneg %p182
        %p458 = pneg %p206
        %p459 = pneg %p203
        %p460 = pneg %p227
        %p461 = pneg %p224
        %p462 = pneg %p248
        %p463 = pneg %p245
        %p464 = pneg %p269
        %p465 = pneg %p266
        %p466 = pneg %p290
        %p467 = pneg %p287
        %p468 = pneg %p316
        %p469 = pneg %p313
        %s470 = sand.u32 %s303, 1
        %s471 = scalar_lea.sflag [#allocation5], %s470
        %s472 = sand.u32 %s303, 1
        %s473 = smul.addr %s472, 8
        %s474 = scalar_lea.vmem [#allocation8], %s473
        %p475 = pneg %p342
        %p476 = pneg %p339
        %s477 = sand.u32 %s329, 1
        %s478 = scalar_lea.sflag [#allocation10], %s477
        %s479 = sand.u32 %s329, 1
        %s480 = smul.addr %s479, 8
        %s481 = scalar_lea.vmem [#allocation9], %s480
        %p482 = scmp.lt.s32.totalorder %s33, 1
        %s483 = scalar_select %p482, %s33, 1
        %s484 = smul.addr %s483, 8
        %s485 = scalar_lea.vmem %s0, %s484
        %p486 = scmp.lt.s32.totalorder %s33, 1
        %s487 = scalar_select %p486, %s33, 1
        %s488 = smul.addr %s487, 8
        %s489 = scalar_lea.vmem %s1, %s488
        %v491 = vld [vmem:[%s485] sm:$0xff]
        %v492 = vld [vmem:[%s489] sm:$0xff]
        %vm493 = vcmask 261120
        %v494 = vsel %vm493, %v491, 0.0
        %495 = vadd.xlane.f32.xlu0 %v494
        %v496 = vpop.xlane.xlu0 %495
        %v497 = vrcp.pop 32.0
        %v498 = vmul.f32 %v496, %v497
        %v499 = vsub.f32 %v491, %v498
        %v500 = vmul.f32 %v499, %v499
        %v501 = vsel %vm493, %v500, 0.0
        %502 = vadd.xlane.f32.xlu0 %v501
        %v503 = vpop.xlane.xlu0 %502
        %v504 = vmul.f32 %v503, %v497
        %v505 = vadd.f32 %v504, 1e-05
        %v506 = vrsqrt.pop %v505
        %v507 = vmul.f32 %v499, %v506
        %v508 = vpack.c.bf16 %v507, %v507
        %v509 = vld [vmem:[%s4] sm:$0xff]
        %v510 = vld [vmem:[%s4 + $0x8] sm:$0xff]
        %v511 = vld [vmem:[%s4 + $0x10] sm:$0xff]
        %v512 = vld [vmem:[%s4 + $0x18] sm:$0xff]
        %v513 = vld [vmem:[#allocation3] sm:$0x3]
        %v515 = vlaneseq
        %v516 = vshrl.u32 %v515, 7
        %v517 = vsub.s32 0, %v516
        %v518 = vrot.slane %v513, %v517
        %v519 = vlaneseq
        %v520 = vshrl.u32 %v519, 7
        %v521 = vsub.s32 1, %v520
        %v522 = vrot.slane %v513, %v521
        %v529 = vunpack.c.l.b16 %v509
        %v530 = vunpack.c.h.b16 %v509
        %v531 = vunpack.c.l.b16 %v510
        %v532 = vunpack.c.h.b16 %v510
        %v533 = vunpack.c.l.b16 %v511
        %v534 = vunpack.c.h.b16 %v511
        %v535 = vunpack.c.l.b16 %v512
        %v536 = vunpack.c.h.b16 %v512
        %v537 = vpack.c.b16 %v531, %v529
        %v538 = vpack.c.b16 %v532, %v530
        %v539 = vpack.c.b16 %v535, %v533
        %v540 = vpack.c.b16 %v536, %v534
        %v546 = vsel %vm493, %v508, 0
        %548 = vmatprep.subr.bf16.mxu0 0
        %549 = vmatpush1.bf16.msra.mxu0 0
        %550 = vmatprep.subr.bf16.mxu0 0
        %551 = vmatpush1.bf16.msra.mxu0 0
        %552 = vmatprep.subr.bf16.mxu0 0
        %553 = vmatpush1.bf16.msra.mxu0 0
        %554 = vmatprep.subr.bf16.mxu0 0
        %555 = vmatpush1.bf16.msra.mxu0 0
        %556 = vmatprep.subr.bf16.mxu0 0
        %557 = vmatpush1.bf16.msra.mxu0 0
        %558 = vmatprep.subr.bf16.mxu0 0
        %559 = vmatpush1.bf16.msra.mxu0 0
        %560 = vmatprep.subr.bf16.mxu0 %v540
        %561 = vmatpush1.bf16.msra.mxu0 %v539
        %562 = vmatprep.subr.bf16.mxu0 %v538
        %563 = vmatpush1.bf16.msra.mxu0 %v537
        %564 = vmatprep.subr.bf16.mxu0 0
        %565 = vmatpush2.bf16.msra.mxu0 0
        %566 = vmatprep.subr.bf16.mxu0 0
        %567 = vmatpush2.bf16.msra.mxu0 0
        %568 = vmatprep.subr.bf16.mxu0 0
        %569 = vmatpush2.bf16.msra.mxu0 0
        %570 = vmatprep.subr.bf16.mxu0 0
        %571 = vmatpush2.bf16.msra.mxu0 0
        %572 = vmatprep.subr.bf16.mxu0 0
        %573 = vmatpush2.bf16.msra.mxu0 0
        %574 = vmatprep.subr.bf16.mxu0 0
        %575 = vmatpush2.bf16.msra.mxu0 0
        %576 = vmatprep.subr.bf16.mxu0 0
        %577 = vmatpush2.bf16.msra.mxu0 0
        %578 = vmatprep.subr.bf16.mxu0 0
        %579 = vmatpush2.bf16.msra.mxu0 0
        %580 = vmatprep.mubr.bf16.mxu0 0
        %581 = vmatmul.mubr.bf16.gmra.mxu0 %v546
        %v582 = vpop.f32.mrf.mxu0
        %v583 = vadd.f32 %v518, %v582
        %v584 = vpop.f32.mrf.mxu0
        %v585 = vadd.f32 %v522, %v584
        %v586 = vpop.f32.mrf.mxu0
        %v587 = vpop.f32.mrf.mxu0
        %588 = vdwg.mxu0
        %v589 = vld [vmem:[%s2] sm:$0xff]
        %v590 = vld [vmem:[%s3] sm:$0xff]
        %v591 = vmul.f32 %v583, %v589
        %593 = vrot.lane.b32.xlu0 %v590, 32
        %v594 = vpop.permute.xlu0 %593
        %v596 = vmul.f32 %v583, %v594
        %598 = vrot.lane.b32.xlu0 %v596, 96
        %v599 = vpop.permute.xlu0 %598
        %v601 = vadd.f32 %v591, %v599
        %v602 = vpack.c.bf16 %v601, %v601
        %604 = vrot.lane.b32.xlu0 %v589, 64
        %v605 = vpop.permute.xlu0 %604
        %v607 = vmul.f32 %v583, %v605
        %608 = vrot.lane.b32.xlu0 %v590, 96
        %v609 = vpop.permute.xlu0 %608
        %v611 = vmul.f32 %v583, %v609
        %613 = vrot.lane.b32.xlu0 %v611, 96
        %v614 = vpop.permute.xlu0 %613
        %v616 = vadd.f32 %v607, %v614
        %v617 = vpack.c.bf16 %v616, %v616
        %v618 = vpack.c.bf16 %v585, %v585
        %620 = vrot.lane.b32.xlu0 %v617, 64
        %v621 = vpop.permute.xlu0 %620
        %vm622 = vcmask 64512
        %v624 = vsel %vm622, %v602, 0
        %v627 = vsel %vm622, %v621, 0
        %629 = vmatprep.subr.bf16.mxu0 0
        %630 = vmatpush1.bf16.xpose.msra.mxu0 0
        %631 = vmatprep.subr.bf16.mxu0 0
        %632 = vmatpush1.bf16.xpose.msra.mxu0 0
        %633 = vmatprep.subr.bf16.mxu0 0
        %634 = vmatpush1.bf16.xpose.msra.mxu0 0
        %635 = vmatprep.subr.bf16.mxu0 0
        %636 = vmatpush1.bf16.xpose.msra.mxu0 0
        %637 = vmatprep.subr.bf16.mxu0 0
        %638 = vmatpush1.bf16.xpose.msra.mxu0 0
        %639 = vmatprep.subr.bf16.mxu0 0
        %640 = vmatpush1.bf16.xpose.msra.mxu0 0
        %641 = vmatprep.subr.bf16.mxu0 0
        %642 = vmatpush1.bf16.xpose.msra.mxu0 0
        %643 = vmatprep.subr.bf16.mxu0 0
        %644 = vmatpush1.bf16.xpose.msra.mxu0 %v627
        %645 = vmatprep.subr.bf16.mxu0 0
        %646 = vmatpush2.bf16.xpose.msra.mxu0 0
        %647 = vmatprep.subr.bf16.mxu0 0
        %648 = vmatpush2.bf16.xpose.msra.mxu0 0
        %649 = vmatprep.subr.bf16.mxu0 0
        %650 = vmatpush2.bf16.xpose.msra.mxu0 0
        %651 = vmatprep.subr.bf16.mxu0 0
        %652 = vmatpush2.bf16.xpose.msra.mxu0 0
        %653 = vmatprep.subr.bf16.mxu0 0
        %654 = vmatpush2.bf16.xpose.msra.mxu0 0
        %655 = vmatprep.subr.bf16.mxu0 0
        %656 = vmatpush2.bf16.xpose.msra.mxu0 0
        %657 = vmatprep.subr.bf16.mxu0 0
        %658 = vmatpush2.bf16.xpose.msra.mxu0 0
        %659 = vmatprep.subr.bf16.mxu0 0
        %660 = vmatpush2.bf16.xpose.msra.mxu0 0
        %661 = vmatprep.mubr.bf16.mxu0 0
        %662 = vmatmul.mubr.bf16.gmra.mxu0 %v624
        %v663 = vpop.f32.mrf.mxu0
        %v664 = vadd.f32 0.0, %v663
        %v665 = vpop.f32.mrf.mxu0
        %v666 = vpop.f32.mrf.mxu0
        %v667 = vpop.f32.mrf.mxu0
        %668 = vdwg.mxu0
        %v669 = vmul.f32 %v664, 0.35355338
        %v670 = vsel %vm622, %v669, -inf
        %671 = vmax.xlane.f32.xlu0 %v670
        %v672 = vpop.xlane.xlu0 %671
        %v673 = vsub.f32 %v669, %v672
        %v674 = vmul.f32 %v673, 1.442695
        %v675 = vpow.pop %v674
        %v676 = vsel %vm622, %v675, 0.0
        %677 = vadd.xlane.f32.xlu0 %v676
        %v678 = vpop.xlane.xlu0 %677
        %v679 = vrcp.pop %v678
        %v680 = vmul.f32 %v675, %v679
        %v681 = vpack.c.bf16 %v680, %v680
        %v683 = vsel %vm622, %v681, 0
        %vm685 = vcmask 1043456
        %v687 = vsel %vm685, %v618, 0
        %689 = vmatprep.subr.bf16.mxu0 0
        %690 = vmatpush1.bf16.msra.mxu0 0
        %691 = vmatprep.subr.bf16.mxu0 0
        %692 = vmatpush1.bf16.msra.mxu0 0
        %693 = vmatprep.subr.bf16.mxu0 0
        %694 = vmatpush1.bf16.msra.mxu0 0
        %695 = vmatprep.subr.bf16.mxu0 0
        %696 = vmatpush1.bf16.msra.mxu0 0
        %697 = vmatprep.subr.bf16.mxu0 0
        %698 = vmatpush1.bf16.msra.mxu0 0
        %699 = vmatprep.subr.bf16.mxu0 0
        %700 = vmatpush1.bf16.msra.mxu0 0
        %701 = vmatprep.subr.bf16.mxu0 0
        %702 = vmatpush1.bf16.msra.mxu0 0
        %703 = vmatprep.subr.bf16.mxu0 0
        %704 = vmatpush1.bf16.msra.mxu0 %v687
        %705 = vmatprep.subr.bf16.mxu0 0
        %706 = vmatpush2.bf16.msra.mxu0 0
        %707 = vmatprep.subr.bf16.mxu0 0
        %708 = vmatpush2.bf16.msra.mxu0 0
        %709 = vmatprep.subr.bf16.mxu0 0
        %710 = vmatpush2.bf16.msra.mxu0 0
        %711 = vmatprep.subr.bf16.mxu0 0
        %712 = vmatpush2.bf16.msra.mxu0 0
        %713 = vmatprep.subr.bf16.mxu0 0
        %714 = vmatpush2.bf16.msra.mxu0 0
        %715 = vmatprep.subr.bf16.mxu0 0
        %716 = vmatpush2.bf16.msra.mxu0 0
        %717 = vmatprep.subr.bf16.mxu0 0
        %718 = vmatpush2.bf16.msra.mxu0 0
        %719 = vmatprep.subr.bf16.mxu0 0
        %720 = vmatpush2.bf16.msra.mxu0 0
        %721 = vmatprep.mubr.bf16.mxu0 0
        %722 = vmatmul.mubr.bf16.gmra.mxu0 %v683
        %v723 = vpop.f32.mrf.mxu0
        %v724 = vadd.f32 0.0, %v723
        %v725 = vpop.f32.mrf.mxu0
        %v726 = vpop.f32.mrf.mxu0
        %v727 = vpop.f32.mrf.mxu0
        %728 = vdwg.mxu0
        %v729 = vpack.c.bf16 %v724, %v724
        %vm730 = vcmask 60416
        %731 = vst.msk [vmem:[#allocation2] sm:$0xf] %vm730, %v729
        %732 = vrot.lane.b32.xlu0 %v589, 8
        %v733 = vpop.permute.xlu0 %732
        %v735 = vmul.f32 %v583, %v733
        %736 = vrot.lane.b32.xlu0 %v590, 40
        %v737 = vpop.permute.xlu0 %736
        %v739 = vmul.f32 %v583, %v737
        %741 = vrot.lane.b32.xlu0 %v739, 96
        %v742 = vpop.permute.xlu0 %741
        %v744 = vadd.f32 %v735, %v742
        %v745 = vpack.c.bf16 %v744, %v744
        %746 = vrot.lane.b32.xlu0 %v589, 72
        %v747 = vpop.permute.xlu0 %746
        %v749 = vmul.f32 %v583, %v747
        %750 = vrot.lane.b32.xlu0 %v590, 104
        %v751 = vpop.permute.xlu0 %750
        %v753 = vmul.f32 %v583, %v751
        %755 = vrot.lane.b32.xlu0 %v753, 96
        %v756 = vpop.permute.xlu0 %755
        %v758 = vadd.f32 %v749, %v756
        %v759 = vpack.c.bf16 %v758, %v758
        %761 = vrot.lane.b32.xlu0 %v745, 120
        %v762 = vpop.permute.xlu0 %761
        %764 = vrot.lane.b32.xlu0 %v759, 56
        %v765 = vpop.permute.xlu0 %764
        %v767 = vsel %vm622, %v762, 0
        %v770 = vsel %vm622, %v765, 0
        %772 = vmatprep.subr.bf16.mxu0 0
        %773 = vmatpush1.bf16.xpose.msra.mxu0 0
        %774 = vmatprep.subr.bf16.mxu0 0
        %775 = vmatpush1.bf16.xpose.msra.mxu0 0
        %776 = vmatprep.subr.bf16.mxu0 0
        %777 = vmatpush1.bf16.xpose.msra.mxu0 0
        %778 = vmatprep.subr.bf16.mxu0 0
        %779 = vmatpush1.bf16.xpose.msra.mxu0 0
        %780 = vmatprep.subr.bf16.mxu0 0
        %781 = vmatpush1.bf16.xpose.msra.mxu0 0
        %782 = vmatprep.subr.bf16.mxu0 0
        %783 = vmatpush1.bf16.xpose.msra.mxu0 0
        %784 = vmatprep.subr.bf16.mxu0 0
        %785 = vmatpush1.bf16.xpose.msra.mxu0 0
        %786 = vmatprep.subr.bf16.mxu0 0
        %787 = vmatpush1.bf16.xpose.msra.mxu0 %v770
        %788 = vmatprep.subr.bf16.mxu0 0
        %789 = vmatpush2.bf16.xpose.msra.mxu0 0
        %790 = vmatprep.subr.bf16.mxu0 0
        %791 = vmatpush2.bf16.xpose.msra.mxu0 0
        %792 = vmatprep.subr.bf16.mxu0 0
        %793 = vmatpush2.bf16.xpose.msra.mxu0 0
        %794 = vmatprep.subr.bf16.mxu0 0
        %795 = vmatpush2.bf16.xpose.msra.mxu0 0
        %796 = vmatprep.subr.bf16.mxu0 0
        %797 = vmatpush2.bf16.xpose.msra.mxu0 0
        %798 = vmatprep.subr.bf16.mxu0 0
        %799 = vmatpush2.bf16.xpose.msra.mxu0 0
        %800 = vmatprep.subr.bf16.mxu0 0
        %801 = vmatpush2.bf16.xpose.msra.mxu0 0
        %802 = vmatprep.subr.bf16.mxu0 0
        %803 = vmatpush2.bf16.xpose.msra.mxu0 0
        %804 = vmatprep.mubr.bf16.mxu0 0
        %805 = vmatmul.mubr.bf16.gmra.mxu0 %v767
        %v806 = vpop.f32.mrf.mxu0
        %v807 = vadd.f32 0.0, %v806
        %v808 = vpop.f32.mrf.mxu0
        %v809 = vpop.f32.mrf.mxu0
        %v810 = vpop.f32.mrf.mxu0
        %811 = vdwg.mxu0
        %v812 = vmul.f32 %v807, 0.35355338
        %v813 = vsel %vm622, %v812, -inf
        %814 = vmax.xlane.f32.xlu0 %v813
        %v815 = vpop.xlane.xlu0 %814
        %v816 = vsub.f32 %v812, %v815
        %v817 = vmul.f32 %v816, 1.442695
        %v818 = vpow.pop %v817
        %v819 = vsel %vm622, %v818, 0.0
        %820 = vadd.xlane.f32.xlu0 %v819
        %v821 = vpop.xlane.xlu0 %820
        %v822 = vrcp.pop %v821
        %v823 = vmul.f32 %v818, %v822
        %v824 = vpack.c.bf16 %v823, %v823
        %826 = vrot.lane.b32.xlu0 %v618, 120
        %v827 = vpop.permute.xlu0 %826
        %v829 = vsel %vm622, %v824, 0
        %v832 = vsel %vm685, %v827, 0
        %834 = vmatprep.subr.bf16.mxu0 0
        %835 = vmatpush1.bf16.msra.mxu0 0
        %836 = vmatprep.subr.bf16.mxu0 0
        %837 = vmatpush1.bf16.msra.mxu0 0
        %838 = vmatprep.subr.bf16.mxu0 0
        %839 = vmatpush1.bf16.msra.mxu0 0
        %840 = vmatprep.subr.bf16.mxu0 0
        %841 = vmatpush1.bf16.msra.mxu0 0
        %842 = vmatprep.subr.bf16.mxu0 0
        %843 = vmatpush1.bf16.msra.mxu0 0
        %844 = vmatprep.subr.bf16.mxu0 0
        %845 = vmatpush1.bf16.msra.mxu0 0
        %846 = vmatprep.subr.bf16.mxu0 0
        %847 = vmatpush1.bf16.msra.mxu0 0
        %848 = vmatprep.subr.bf16.mxu0 0
        %849 = vmatpush1.bf16.msra.mxu0 %v832
        %850 = vmatprep.subr.bf16.mxu0 0
        %851 = vmatpush2.bf16.msra.mxu0 0
        %852 = vmatprep.subr.bf16.mxu0 0
        %853 = vmatpush2.bf16.msra.mxu0 0
        %854 = vmatprep.subr.bf16.mxu0 0
        %855 = vmatpush2.bf16.msra.mxu0 0
        %856 = vmatprep.subr.bf16.mxu0 0
        %857 = vmatpush2.bf16.msra.mxu0 0
        %858 = vmatprep.subr.bf16.mxu0 0
        %859 = vmatpush2.bf16.msra.mxu0 0
        %860 = vmatprep.subr.bf16.mxu0 0
        %861 = vmatpush2.bf16.msra.mxu0 0
        %862 = vmatprep.subr.bf16.mxu0 0
        %863 = vmatpush2.bf16.msra.mxu0 0
        %864 = vmatprep.subr.bf16.mxu0 0
        %865 = vmatpush2.bf16.msra.mxu0 0
        %866 = vmatprep.mubr.bf16.mxu0 0
        %867 = vmatmul.mubr.bf16.gmra.mxu0 %v829
        %v868 = vpop.f32.mrf.mxu0
        %v869 = vadd.f32 0.0, %v868
        %v870 = vpop.f32.mrf.mxu0
        %v871 = vpop.f32.mrf.mxu0
        %v872 = vpop.f32.mrf.mxu0
        %873 = vdwg.mxu0
        %v874 = vpack.c.bf16 %v869, %v869
        %v876 = vunpack.c.l.b16 %v874
        %v877 = vpack.c.b16 %v876, %v876
        %878 = vrot.lane.b32.xlu0 %v877, 8
        %v879 = vpop.permute.xlu0 %878
        %vm881 = vcmask 126016
        %882 = vst.msk [vmem:[#allocation2] sm:$0xf] %vm881, %v879
        %883 = vrot.lane.b32.xlu0 %v589, 16
        %v884 = vpop.permute.xlu0 %883
        %v886 = vmul.f32 %v583, %v884
        %887 = vrot.lane.b32.xlu0 %v590, 48
        %v888 = vpop.permute.xlu0 %887
        %v890 = vmul.f32 %v583, %v888
        %892 = vrot.lane.b32.xlu0 %v890, 96
        %v893 = vpop.permute.xlu0 %892
        %v895 = vadd.f32 %v886, %v893
        %v896 = vpack.c.bf16 %v895, %v895
        %897 = vrot.lane.b32.xlu0 %v589, 80
        %v898 = vpop.permute.xlu0 %897
        %v900 = vmul.f32 %v583, %v898
        %901 = vrot.lane.b32.xlu0 %v590, 112
        %v902 = vpop.permute.xlu0 %901
        %v904 = vmul.f32 %v583, %v902
        %906 = vrot.lane.b32.xlu0 %v904, 96
        %v907 = vpop.permute.xlu0 %906
        %v909 = vadd.f32 %v900, %v907
        %v910 = vpack.c.bf16 %v909, %v909
        %912 = vrot.lane.b32.xlu0 %v896, 112
        %v913 = vpop.permute.xlu0 %912
        %915 = vrot.lane.b32.xlu0 %v910, 48
        %v916 = vpop.permute.xlu0 %915
        %v918 = vsel %vm622, %v913, 0
        %v921 = vsel %vm622, %v916, 0
        %923 = vmatprep.subr.bf16.mxu0 0
        %924 = vmatpush1.bf16.xpose.msra.mxu0 0
        %925 = vmatprep.subr.bf16.mxu0 0
        %926 = vmatpush1.bf16.xpose.msra.mxu0 0
        %927 = vmatprep.subr.bf16.mxu0 0
        %928 = vmatpush1.bf16.xpose.msra.mxu0 0
        %929 = vmatprep.subr.bf16.mxu0 0
        %930 = vmatpush1.bf16.xpose.msra.mxu0 0
        %931 = vmatprep.subr.bf16.mxu0 0
        %932 = vmatpush1.bf16.xpose.msra.mxu0 0
        %933 = vmatprep.subr.bf16.mxu0 0
        %934 = vmatpush1.bf16.xpose.msra.mxu0 0
        %935 = vmatprep.subr.bf16.mxu0 0
        %936 = vmatpush1.bf16.xpose.msra.mxu0 0
        %937 = vmatprep.subr.bf16.mxu0 0
        %938 = vmatpush1.bf16.xpose.msra.mxu0 %v921
        %939 = vmatprep.subr.bf16.mxu0 0
        %940 = vmatpush2.bf16.xpose.msra.mxu0 0
        %941 = vmatprep.subr.bf16.mxu0 0
        %942 = vmatpush2.bf16.xpose.msra.mxu0 0
        %943 = vmatprep.subr.bf16.mxu0 0
        %944 = vmatpush2.bf16.xpose.msra.mxu0 0
        %945 = vmatprep.subr.bf16.mxu0 0
        %946 = vmatpush2.bf16.xpose.msra.mxu0 0
        %947 = vmatprep.subr.bf16.mxu0 0
        %948 = vmatpush2.bf16.xpose.msra.mxu0 0
        %949 = vmatprep.subr.bf16.mxu0 0
        %950 = vmatpush2.bf16.xpose.msra.mxu0 0
        %951 = vmatprep.subr.bf16.mxu0 0
        %952 = vmatpush2.bf16.xpose.msra.mxu0 0
        %953 = vmatprep.subr.bf16.mxu0 0
        %954 = vmatpush2.bf16.xpose.msra.mxu0 0
        %955 = vmatprep.mubr.bf16.mxu0 0
        %956 = vmatmul.mubr.bf16.gmra.mxu0 %v918
        %v957 = vpop.f32.mrf.mxu0
        %v958 = vadd.f32 0.0, %v957
        %v959 = vpop.f32.mrf.mxu0
        %v960 = vpop.f32.mrf.mxu0
        %v961 = vpop.f32.mrf.mxu0
        %962 = vdwg.mxu0
        %v963 = vmul.f32 %v958, 0.35355338
        %v964 = vsel %vm622, %v963, -inf
        %965 = vmax.xlane.f32.xlu0 %v964
        %v966 = vpop.xlane.xlu0 %965
        %v967 = vsub.f32 %v963, %v966
        %v968 = vmul.f32 %v967, 1.442695
        %v969 = vpow.pop %v968
        %v970 = vsel %vm622, %v969, 0.0
        %971 = vadd.xlane.f32.xlu0 %v970
        %v972 = vpop.xlane.xlu0 %971
        %v973 = vrcp.pop %v972
        %v974 = vmul.f32 %v969, %v973
        %v975 = vpack.c.bf16 %v974, %v974
        %976 = vrot.lane.b32.xlu0 %v618, 112
        %v977 = vpop.permute.xlu0 %976
        %v979 = vsel %vm622, %v975, 0
        %v982 = vsel %vm685, %v977, 0
        %984 = vmatprep.subr.bf16.mxu0 0
        %985 = vmatpush1.bf16.msra.mxu0 0
        %986 = vmatprep.subr.bf16.mxu0 0
        %987 = vmatpush1.bf16.msra.mxu0 0
        %988 = vmatprep.subr.bf16.mxu0 0
        %989 = vmatpush1.bf16.msra.mxu0 0
        %990 = vmatprep.subr.bf16.mxu0 0
        %991 = vmatpush1.bf16.msra.mxu0 0
        %992 = vmatprep.subr.bf16.mxu0 0
        %993 = vmatpush1.bf16.msra.mxu0 0
        %994 = vmatprep.subr.bf16.mxu0 0
        %995 = vmatpush1.bf16.msra.mxu0 0
        %996 = vmatprep.subr.bf16.mxu0 0
        %997 = vmatpush1.bf16.msra.mxu0 0
        %998 = vmatprep.subr.bf16.mxu0 0
        %999 = vmatpush1.bf16.msra.mxu0 %v982
        %1000 = vmatprep.subr.bf16.mxu0 0
        %1001 = vmatpush2.bf16.msra.mxu0 0
        %1002 = vmatprep.subr.bf16.mxu0 0
        %1003 = vmatpush2.bf16.msra.mxu0 0
        %1004 = vmatprep.subr.bf16.mxu0 0
        %1005 = vmatpush2.bf16.msra.mxu0 0
        %1006 = vmatprep.subr.bf16.mxu0 0
        %1007 = vmatpush2.bf16.msra.mxu0 0
        %1008 = vmatprep.subr.bf16.mxu0 0
        %1009 = vmatpush2.bf16.msra.mxu0 0
        %1010 = vmatprep.subr.bf16.mxu0 0
        %1011 = vmatpush2.bf16.msra.mxu0 0
        %1012 = vmatprep.subr.bf16.mxu0 0
        %1013 = vmatpush2.bf16.msra.mxu0 0
        %1014 = vmatprep.subr.bf16.mxu0 0
        %1015 = vmatpush2.bf16.msra.mxu0 0
        %1016 = vmatprep.mubr.bf16.mxu0 0
        %1017 = vmatmul.mubr.bf16.gmra.mxu0 %v979
        %v1018 = vpop.f32.mrf.mxu0
        %v1019 = vadd.f32 0.0, %v1018
        %v1020 = vpop.f32.mrf.mxu0
        %v1021 = vpop.f32.mrf.mxu0
        %v1022 = vpop.f32.mrf.mxu0
        %1023 = vdwg.mxu0
        %v1024 = vpack.c.bf16 %v1019, %v1019
        %v1026 = vunpack.c.l.b16 %v1024
        %v1027 = vpack.c.b16 %v1026, %v1026
        %1028 = vrot.lane.b32.xlu0 %v1027, 16
        %v1029 = vpop.permute.xlu0 %1028
        %vm1031 = vcmask 191616
        %1032 = vst.msk [vmem:[#allocation2] sm:$0xf] %vm1031, %v1029
        %1033 = vrot.lane.b32.xlu0 %v589, 24
        %v1034 = vpop.permute.xlu0 %1033
        %v1036 = vmul.f32 %v583, %v1034
        %1037 = vrot.lane.b32.xlu0 %v590, 56
        %v1038 = vpop.permute.xlu0 %1037
        %v1040 = vmul.f32 %v583, %v1038
        %1042 = vrot.lane.b32.xlu0 %v1040, 96
        %v1043 = vpop.permute.xlu0 %1042
        %v1045 = vadd.f32 %v1036, %v1043
        %v1046 = vpack.c.bf16 %v1045, %v1045
        %1047 = vrot.lane.b32.xlu0 %v589, 88
        %v1048 = vpop.permute.xlu0 %1047
        %v1050 = vmul.f32 %v583, %v1048
        %1051 = vrot.lane.b32.xlu0 %v590, 120
        %v1052 = vpop.permute.xlu0 %1051
        %v1054 = vmul.f32 %v583, %v1052
        %1056 = vrot.lane.b32.xlu0 %v1054, 96
        %v1057 = vpop.permute.xlu0 %1056
        %v1059 = vadd.f32 %v1050, %v1057
        %v1060 = vpack.c.bf16 %v1059, %v1059
        %1062 = vrot.lane.b32.xlu0 %v1046, 104
        %v1063 = vpop.permute.xlu0 %1062
        %1065 = vrot.lane.b32.xlu0 %v1060, 40
        %v1066 = vpop.permute.xlu0 %1065
        %v1068 = vsel %vm622, %v1063, 0
        %v1071 = vsel %vm622, %v1066, 0
        %1073 = vmatprep.subr.bf16.mxu0 0
        %1074 = vmatpush1.bf16.xpose.msra.mxu0 0
        %1075 = vmatprep.subr.bf16.mxu0 0
        %1076 = vmatpush1.bf16.xpose.msra.mxu0 0
        %1077 = vmatprep.subr.bf16.mxu0 0
        %1078 = vmatpush1.bf16.xpose.msra.mxu0 0
        %1079 = vmatprep.subr.bf16.mxu0 0
        %1080 = vmatpush1.bf16.xpose.msra.mxu0 0
        %1081 = vmatprep.subr.bf16.mxu0 0
        %1082 = vmatpush1.bf16.xpose.msra.mxu0 0
        %1083 = vmatprep.subr.bf16.mxu0 0
        %1084 = vmatpush1.bf16.xpose.msra.mxu0 0
        %1085 = vmatprep.subr.bf16.mxu0 0
        %1086 = vmatpush1.bf16.xpose.msra.mxu0 0
        %1087 = vmatprep.subr.bf16.mxu0 0
        %1088 = vmatpush1.bf16.xpose.msra.mxu0 %v1071
        %1089 = vmatprep.subr.bf16.mxu0 0
        %1090 = vmatpush2.bf16.xpose.msra.mxu0 0
        %1091 = vmatprep.subr.bf16.mxu0 0
        %1092 = vmatpush2.bf16.xpose.msra.mxu0 0
        %1093 = vmatprep.subr.bf16.mxu0 0
        %1094 = vmatpush2.bf16.xpose.msra.mxu0 0
        %1095 = vmatprep.subr.bf16.mxu0 0
        %1096 = vmatpush2.bf16.xpose.msra.mxu0 0
        %1097 = vmatprep.subr.bf16.mxu0 0
        %1098 = vmatpush2.bf16.xpose.msra.mxu0 0
        %1099 = vmatprep.subr.bf16.mxu0 0
        %1100 = vmatpush2.bf16.xpose.msra.mxu0 0
        %1101 = vmatprep.subr.bf16.mxu0 0
        %1102 = vmatpush2.bf16.xpose.msra.mxu0 0
        %1103 = vmatprep.subr.bf16.mxu0 0
        %1104 = vmatpush2.bf16.xpose.msra.mxu0 0
        %1105 = vmatprep.mubr.bf16.mxu0 0
        %1106 = vmatmul.mubr.bf16.gmra.mxu0 %v1068
        %v1107 = vpop.f32.mrf.mxu0
        %v1108 = vadd.f32 0.0, %v1107
        %v1109 = vpop.f32.mrf.mxu0
        %v1110 = vpop.f32.mrf.mxu0
        %v1111 = vpop.f32.mrf.mxu0
        %1112 = vdwg.mxu0
        %v1113 = vmul.f32 %v1108, 0.35355338
        %v1114 = vsel %vm622, %v1113, -inf
        %1115 = vmax.xlane.f32.xlu0 %v1114
        %v1116 = vpop.xlane.xlu0 %1115
        %v1117 = vsub.f32 %v1113, %v1116
        %v1118 = vmul.f32 %v1117, 1.442695
        %v1119 = vpow.pop %v1118
        %v1120 = vsel %vm622, %v1119, 0.0
        %1121 = vadd.xlane.f32.xlu0 %v1120
        %v1122 = vpop.xlane.xlu0 %1121
        %v1123 = vrcp.pop %v1122
        %v1124 = vmul.f32 %v1119, %v1123
        %v1125 = vpack.c.bf16 %v1124, %v1124
        %1126 = vrot.lane.b32.xlu0 %v618, 104
        %v1127 = vpop.permute.xlu0 %1126
        %v1129 = vsel %vm622, %v1125, 0
        %v1132 = vsel %vm685, %v1127, 0
        %1134 = vmatprep.subr.bf16.mxu0 0
        %1135 = vmatpush1.bf16.msra.mxu0 0
        %1136 = vmatprep.subr.bf16.mxu0 0
        %1137 = vmatpush1.bf16.msra.mxu0 0
        %1138 = vmatprep.subr.bf16.mxu0 0
        %1139 = vmatpush1.bf16.msra.mxu0 0
        %1140 = vmatprep.subr.bf16.mxu0 0
        %1141 = vmatpush1.bf16.msra.mxu0 0
        %1142 = vmatprep.subr.bf16.mxu0 0
        %1143 = vmatpush1.bf16.msra.mxu0 0
        %1144 = vmatprep.subr.bf16.mxu0 0
        %1145 = vmatpush1.bf16.msra.mxu0 0
        %1146 = vmatprep.subr.bf16.mxu0 0
        %1147 = vmatpush1.bf16.msra.mxu0 0
        %1148 = vmatprep.subr.bf16.mxu0 0
        %1149 = vmatpush1.bf16.msra.mxu0 %v1132
        %1150 = vmatprep.subr.bf16.mxu0 0
        %1151 = vmatpush2.bf16.msra.mxu0 0
        %1152 = vmatprep.subr.bf16.mxu0 0
        %1153 = vmatpush2.bf16.msra.mxu0 0
        %1154 = vmatprep.subr.bf16.mxu0 0
        %1155 = vmatpush2.bf16.msra.mxu0 0
        %1156 = vmatprep.subr.bf16.mxu0 0
        %1157 = vmatpush2.bf16.msra.mxu0 0
        %1158 = vmatprep.subr.bf16.mxu0 0
        %1159 = vmatpush2.bf16.msra.mxu0 0
        %1160 = vmatprep.subr.bf16.mxu0 0
        %1161 = vmatpush2.bf16.msra.mxu0 0
        %1162 = vmatprep.subr.bf16.mxu0 0
        %1163 = vmatpush2.bf16.msra.mxu0 0
        %1164 = vmatprep.subr.bf16.mxu0 0
        %1165 = vmatpush2.bf16.msra.mxu0 0
        %1166 = vmatprep.mubr.bf16.mxu0 0
        %1167 = vmatmul.mubr.bf16.gmra.mxu0 %v1129
        %v1168 = vpop.f32.mrf.mxu0
        %v1169 = vadd.f32 0.0, %v1168
        %v1170 = vpop.f32.mrf.mxu0
        %v1171 = vpop.f32.mrf.mxu0
        %v1172 = vpop.f32.mrf.mxu0
        %1173 = vdwg.mxu0
        %v1174 = vpack.c.bf16 %v1169, %v1169
        %v1176 = vunpack.c.l.b16 %v1174
        %v1177 = vpack.c.b16 %v1176, %v1176
        %1178 = vrot.lane.b32.xlu0 %v1177, 24
        %v1179 = vpop.permute.xlu0 %1178
        %vm1181 = vcmask 257216
        %1182 = vst.msk [vmem:[#allocation2] sm:$0xf] %vm1181, %v1179
        %v1183 = vld [vmem:[#allocation2] sm:$0xf]
        %v1184 = vld [vmem:[%s6] sm:$0xf]
        %v1185 = vld [vmem:[%s6 + $0x4] sm:$0xf]
        %v1186 = vld [vmem:[%s6 + $0x8] sm:$0xf]
        %v1187 = vld [vmem:[%s6 + $0xc] sm:$0xf]
        %v1188 = vld [vmem:[#allocation6] sm:$0x1]
        %v1190 = vlaneseq
        %v1191 = vshrl.u32 %v1190, 7
        %v1192 = vsub.s32 0, %v1191
        %v1193 = vrot.slane %v1188, %v1192
        %v1199 = vunpack.c.l.b16 %v1184
        %v1200 = vunpack.c.l.b16 %v1185
        %v1201 = vunpack.c.l.b16 %v1186
        %v1202 = vunpack.c.l.b16 %v1187
        %v1203 = vpack.c.b16 %v1200, %v1199
        %v1204 = vpack.c.b16 %v1202, %v1201
        %v1208 = vsel %vm493, %v1183, 0
        %1210 = vmatprep.subr.bf16.mxu0 0
        %1211 = vmatpush1.bf16.msra.mxu0 0
        %1212 = vmatprep.subr.bf16.mxu0 0
        %1213 = vmatpush1.bf16.msra.mxu0 0
        %1214 = vmatprep.subr.bf16.mxu0 0
        %1215 = vmatpush1.bf16.msra.mxu0 0
        %1216 = vmatprep.subr.bf16.mxu0 0
        %1217 = vmatpush1.bf16.msra.mxu0 0
        %1218 = vmatprep.subr.bf16.mxu0 0
        %1219 = vmatpush1.bf16.msra.mxu0 0
        %1220 = vmatprep.subr.bf16.mxu0 0
        %1221 = vmatpush1.bf16.msra.mxu0 0
        %1222 = vmatprep.subr.bf16.mxu0 0
        %1223 = vmatpush1.bf16.msra.mxu0 %v1204
        %1224 = vmatprep.subr.bf16.mxu0 0
        %1225 = vmatpush1.bf16.msra.mxu0 %v1203
        %1226 = vmatprep.subr.bf16.mxu0 0
        %1227 = vmatpush2.bf16.msra.mxu0 0
        %1228 = vmatprep.subr.bf16.mxu0 0
        %1229 = vmatpush2.bf16.msra.mxu0 0
        %1230 = vmatprep.subr.bf16.mxu0 0
        %1231 = vmatpush2.bf16.msra.mxu0 0
        %1232 = vmatprep.subr.bf16.mxu0 0
        %1233 = vmatpush2.bf16.msra.mxu0 0
        %1234 = vmatprep.subr.bf16.mxu0 0
        %1235 = vmatpush2.bf16.msra.mxu0 0
        %1236 = vmatprep.subr.bf16.mxu0 0
        %1237 = vmatpush2.bf16.msra.mxu0 0
        %1238 = vmatprep.subr.bf16.mxu0 0
        %1239 = vmatpush2.bf16.msra.mxu0 0
        %1240 = vmatprep.subr.bf16.mxu0 0
        %1241 = vmatpush2.bf16.msra.mxu0 0
        %1242 = vmatprep.mubr.bf16.mxu0 0
        %1243 = vmatmul.mubr.bf16.gmra.mxu0 %v1208
        %v1244 = vpop.f32.mrf.mxu0
        %v1245 = vadd.f32 %v1193, %v1244
        %v1246 = vpop.f32.mrf.mxu0
        %v1247 = vpop.f32.mrf.mxu0
        %v1248 = vpop.f32.mrf.mxu0
        %1249 = vdwg.mxu0
        %1251 = vset.pattern.permute.xlu0 0
        %1252 = vperm.xlu0 %1251, %v492
        %v1253 = vpop.permute.xlu0 %1252
        %v1255 = vmul.f32 %v1245, %v1253
        %v1256 = vadd.f32 %v491, %v1255
        %v1257 = vsel %vm493, %v1256, 0.0
        %1258 = vadd.xlane.f32.xlu0 %v1257
        %v1259 = vpop.xlane.xlu0 %1258
        %v1260 = vmul.f32 %v1259, %v497
        %v1261 = vsub.f32 %v1256, %v1260
        %v1262 = vmul.f32 %v1261, %v1261
        %v1263 = vsel %vm493, %v1262, 0.0
        %1264 = vadd.xlane.f32.xlu0 %v1263
        %v1265 = vpop.xlane.xlu0 %1264
        %v1266 = vmul.f32 %v1265, %v497
        %v1267 = vadd.f32 %v1266, 1e-05
        %v1268 = vrsqrt.pop %v1267
        %v1269 = vmul.f32 %v1261, %v1268
        %v1270 = vpack.c.bf16 %v1269, %v1269
        %v1271 = vld [vmem:[%s8] sm:$0xf]
        %v1272 = vld [vmem:[%s8 + $0x4] sm:$0xf]
        %v1273 = vld [vmem:[%s8 + $0x8] sm:$0xf]
        %v1274 = vld [vmem:[%s8 + $0xc] sm:$0xf]
        %v1275 = vld [vmem:[%s9] sm:$0x1]
        %v1277 = vlaneseq
        %v1278 = vshrl.u32 %v1277, 7
        %v1279 = vsub.s32 0, %v1278
        %v1280 = vrot.slane %v1275, %v1279
        %v1286 = vunpack.c.l.b16 %v1271
        %v1287 = vunpack.c.l.b16 %v1272
        %v1288 = vunpack.c.l.b16 %v1273
        %v1289 = vunpack.c.l.b16 %v1274
        %v1290 = vpack.c.b16 %v1287, %v1286
        %v1291 = vpack.c.b16 %v1289, %v1288
        %v1295 = vsel %vm493, %v1270, 0
        %1297 = vmatprep.subr.bf16.mxu0 0
        %1298 = vmatpush1.bf16.msra.mxu0 0
        %1299 = vmatprep.subr.bf16.mxu0 0
        %1300 = vmatpush1.bf16.msra.mxu0 0
        %1301 = vmatprep.subr.bf16.mxu0 0
        %1302 = vmatpush1.bf16.msra.mxu0 0
        %1303 = vmatprep.subr.bf16.mxu0 0
        %1304 = vmatpush1.bf16.msra.mxu0 0
        %1305 = vmatprep.subr.bf16.mxu0 0
        %1306 = vmatpush1.bf16.msra.mxu0 0
        %1307 = vmatprep.subr.bf16.mxu0 0
        %1308 = vmatpush1.bf16.msra.mxu0 0
        %1309 = vmatprep.subr.bf16.mxu0 0
        %1310 = vmatpush1.bf16.msra.mxu0 %v1291
        %1311 = vmatprep.subr.bf16.mxu0 0
        %1312 = vmatpush1.bf16.msra.mxu0 %v1290
        %1313 = vmatprep.subr.bf16.mxu0 0
        %1314 = vmatpush2.bf16.msra.mxu0 0
        %1315 = vmatprep.subr.bf16.mxu0 0
        %1316 = vmatpush2.bf16.msra.mxu0 0
        %1317 = vmatprep.subr.bf16.mxu0 0
        %1318 = vmatpush2.bf16.msra.mxu0 0
        %1319 = vmatprep.subr.bf16.mxu0 0
        %1320 = vmatpush2.bf16.msra.mxu0 0
        %1321 = vmatprep.subr.bf16.mxu0 0
        %1322 = vmatpush2.bf16.msra.mxu0 0
        %1323 = vmatprep.subr.bf16.mxu0 0
        %1324 = vmatpush2.bf16.msra.mxu0 0
        %1325 = vmatprep.subr.bf16.mxu0 0
        %1326 = vmatpush2.bf16.msra.mxu0 0
        %1327 = vmatprep.subr.bf16.mxu0 0
        %1328 = vmatpush2.bf16.msra.mxu0 0
        %1329 = vmatprep.mubr.bf16.mxu0 0
        %1330 = vmatmul.mubr.bf16.gmra.mxu0 %v1295
        %v1331 = vpop.f32.mrf.mxu0
        %v1332 = vadd.f32 %v1280, %v1331
        %v1333 = vpop.f32.mrf.mxu0
        %v1334 = vpop.f32.mrf.mxu0
        %v1335 = vpop.f32.mrf.mxu0
        %1336 = vdwg.mxu0
        %v1337 = vmul.f32 %v1332, %v1253
        %v1338 = vmul.f32 %v1337, 0.5
        %v1339 = vmul.f32 %v1337, 0.70710677
        %vm1340 = vcmp.ge.f32.partialorder %v1339, 0.0
        %v1341 = vsel %vm1340, 1.0, -1.0
        %v1342 = vand.u32 2147483647, %v1339
        %v1343 = vmul.f32 %v1342, 0.3275911
        %v1344 = vadd.f32 %v1343, 1.0
        %v1345 = vrcp.pop %v1344
        %v1346 = vmul.f32 1.0, %v1345
        %v1347 = vmul.f32 %v1346, 1.0614054
        %v1348 = vadd.f32 %v1347, -1.4531521
        %v1349 = vmul.f32 %v1346, %v1348
        %v1350 = vadd.f32 %v1349, 1.4214138
        %v1351 = vmul.f32 %v1346, %v1350
        %v1352 = vadd.f32 %v1351, -0.28449672
        %v1353 = vmul.f32 %v1346, %v1352
        %v1354 = vadd.f32 %v1353, 0.2548296
        %v1355 = vmul.f32 %v1346, %v1354
        %v1356 = vsub.f32 0.0, %v1342
        %v1357 = vmul.f32 %v1356, %v1342
        %v1358 = vmul.f32 %v1357, 1.442695
        %v1359 = vpow.pop %v1358
        %v1360 = vmul.f32 %v1355, %v1359
        %v1361 = vsub.f32 1.0, %v1360
        %v1362 = vmul.f32 %v1341, %v1361
        %v1363 = vadd.f32 %v1362, 1.0
        %v1364 = vmul.f32 %v1338, %v1363
        %v1365 = vpack.c.bf16 %v1364, %v1364
        %v1366 = vld [vmem:[%s10] sm:$0xf]
        %v1367 = vld [vmem:[%s10 + $0x4] sm:$0xf]
        %v1368 = vld [vmem:[%s10 + $0x8] sm:$0xf]
        %v1369 = vld [vmem:[%s10 + $0xc] sm:$0xf]
        %v1370 = vld [vmem:[%s10 + $0x10] sm:$0xf]
        %v1371 = vld [vmem:[%s10 + $0x14] sm:$0xf]
        %v1372 = vld [vmem:[%s10 + $0x18] sm:$0xf]
        %v1373 = vld [vmem:[%s10 + $0x1c] sm:$0xf]
        %v1374 = vld [vmem:[%s10 + $0x20] sm:$0xf]
        %v1375 = vld [vmem:[%s10 + $0x24] sm:$0xf]
        %v1376 = vld [vmem:[%s10 + $0x28] sm:$0xf]
        %v1377 = vld [vmem:[%s10 + $0x2c] sm:$0xf]
        %v1378 = vld [vmem:[%s10 + $0x30] sm:$0xf]
        %v1379 = vld [vmem:[%s10 + $0x34] sm:$0xf]
        %v1380 = vld [vmem:[%s10 + $0x38] sm:$0xf]
        %v1381 = vld [vmem:[%s10 + $0x3c] sm:$0xf]
        %v1382 = vld [vmem:[%s11] sm:$0x1]
        %v1384 = vlaneseq
        %v1385 = vshrl.u32 %v1384, 7
        %v1386 = vsub.s32 0, %v1385
        %v1387 = vrot.slane %v1382, %v1386
        %v1405 = vunpack.c.l.b16 %v1366
        %v1406 = vunpack.c.l.b16 %v1367
        %v1407 = vunpack.c.l.b16 %v1368
        %v1408 = vunpack.c.l.b16 %v1369
        %v1409 = vunpack.c.l.b16 %v1370
        %v1410 = vunpack.c.l.b16 %v1371
        %v1411 = vunpack.c.l.b16 %v1372
        %v1412 = vunpack.c.l.b16 %v1373
        %v1413 = vunpack.c.l.b16 %v1374
        %v1414 = vunpack.c.l.b16 %v1375
        %v1415 = vunpack.c.l.b16 %v1376
        %v1416 = vunpack.c.l.b16 %v1377
        %v1417 = vunpack.c.l.b16 %v1378
        %v1418 = vunpack.c.l.b16 %v1379
        %v1419 = vunpack.c.l.b16 %v1380
        %v1420 = vunpack.c.l.b16 %v1381
        %v1421 = vpack.c.b16 %v1406, %v1405
        %v1422 = vpack.c.b16 %v1408, %v1407
        %v1423 = vpack.c.b16 %v1410, %v1409
        %v1424 = vpack.c.b16 %v1412, %v1411
        %v1425 = vpack.c.b16 %v1414, %v1413
        %v1426 = vpack.c.b16 %v1416, %v1415
        %v1427 = vpack.c.b16 %v1418, %v1417
        %v1428 = vpack.c.b16 %v1420, %v1419
        %1437 = vmatprep.subr.bf16.mxu0 0
        %1438 = vmatpush1.bf16.msra.mxu0 %v1428
        %1439 = vmatprep.subr.bf16.mxu0 0
        %1440 = vmatpush1.bf16.msra.mxu0 %v1427
        %1441 = vmatprep.subr.bf16.mxu0 0
        %1442 = vmatpush1.bf16.msra.mxu0 %v1426
        %1443 = vmatprep.subr.bf16.mxu0 0
        %1444 = vmatpush1.bf16.msra.mxu0 %v1425
        %1445 = vmatprep.subr.bf16.mxu0 0
        %1446 = vmatpush1.bf16.msra.mxu0 %v1424
        %1447 = vmatprep.subr.bf16.mxu0 0
        %1448 = vmatpush1.bf16.msra.mxu0 %v1423
        %1449 = vmatprep.subr.bf16.mxu0 0
        %1450 = vmatpush1.bf16.msra.mxu0 %v1422
        %1451 = vmatprep.subr.bf16.mxu0 0
        %1452 = vmatpush1.bf16.msra.mxu0 %v1421
        %1453 = vmatprep.subr.bf16.mxu0 0
        %1454 = vmatpush2.bf16.msra.mxu0 0
        %1455 = vmatprep.subr.bf16.mxu0 0
        %1456 = vmatpush2.bf16.msra.mxu0 0
        %1457 = vmatprep.subr.bf16.mxu0 0
        %1458 = vmatpush2.bf16.msra.mxu0 0
        %1459 = vmatprep.subr.bf16.mxu0 0
        %1460 = vmatpush2.bf16.msra.mxu0 0
        %1461 = vmatprep.subr.bf16.mxu0 0
        %1462 = vmatpush2.bf16.msra.mxu0 0
        %1463 = vmatprep.subr.bf16.mxu0 0
        %1464 = vmatpush2.bf16.msra.mxu0 0
        %1465 = vmatprep.subr.bf16.mxu0 0
        %1466 = vmatpush2.bf16.msra.mxu0 0
        %1467 = vmatprep.subr.bf16.mxu0 0
        %1468 = vmatpush2.bf16.msra.mxu0 0
        %1469 = vmatprep.mubr.bf16.mxu0 0
        %1470 = vmatmul.mubr.bf16.gmra.mxu0 %v1365
        %v1471 = vpop.f32.mrf.mxu0
        %v1472 = vadd.f32 %v1387, %v1471
        %v1473 = vpop.f32.mrf.mxu0
        %v1474 = vpop.f32.mrf.mxu0
        %v1475 = vpop.f32.mrf.mxu0
        %1476 = vdwg.mxu0
        %v1477 = vmul.f32 %v1472, %v1253
        %v1478 = vadd.f32 %v1256, %v1477
        %1479 = vst.msk [vmem:[%s474] sm:$0xff] %vm493, %v1478
        %1480 = vst.msk [vmem:[%s481] sm:$0xff] %vm493, %v1477
        %s1481 = sand.u32 %s303, 1
        %s1482 = scalar_lea.sflag [#allocation5], %s1481
        %s1483 = sand.u32 %s303, 1
        %s1484 = smul.addr %s1483, 8
        %s1485 = scalar_lea.vmem [#allocation8], %s1484
        %s1486 = sand.u32 %s329, 1
        %s1487 = scalar_lea.sflag [#allocation10], %s1486
        %s1488 = sand.u32 %s329, 1
        %s1489 = smul.addr %s1488, 8
        %s1490 = scalar_lea.vmem [#allocation9], %s1489
        // Predicated region
        $region77: #{tpu_custom_call.1} parent=67 // pred_check
          %p1491 = pneg %p313
        $region78: #{tpu_custom_call.1} parent=67 // pred_check_branch
          %1493 = sbr.rel (%p1491) target = $region80
        $region79: #{tpu_custom_call.1} parent=67 // pred_region
          %s1495 = ssub.s32 128, 128
          %1496 = vsyncadd %s1482, %s1495
          %s1497 = smul.addr %s33, 128
          %s1498 = scalar_lea.hbm %s12, %s1497
          %s1500 = sshll.u32 %s1485, 4
          %s1501 = int_to_ptr.vmem [resolvable:$true] %s1500
          %1503 = dma.vmem_to_hbm [thread:$0]  %s1501, 128, %s1498, %s1482
        $region80: #{tpu_custom_call.1} parent=67 // pred_fallthru
          _
        // Predicated region
        $region81: #{tpu_custom_call.1} parent=67 // pred_check
          %p1504 = pneg %p339
        $region82: #{tpu_custom_call.1} parent=67 // pred_check_branch
          %1506 = sbr.rel (%p1504) target = $region84
        $region83: #{tpu_custom_call.1} parent=67 // pred_region
          %s1508 = ssub.s32 128, 128
          %1509 = vsyncadd %s1487, %s1508
          %s1510 = smul.addr %s33, 128
          %s1511 = scalar_lea.hbm %s13, %s1510
          %s1513 = sshll.u32 %s1490, 4
          %s1514 = int_to_ptr.vmem [resolvable:$true] %s1513
          %1516 = dma.vmem_to_hbm [thread:$0]  %s1514, 128, %s1511, %s1487
        $region84: #{tpu_custom_call.1} parent=67 // pred_fallthru
          _
      $region68: #{tpu_custom_call.1} parent=5 // pred_fallthru
        _
      %p1517 = scmp.le.s32.totalorder 2, %s28
      // Predicated region
      $region85: #{tpu_custom_call.1} parent=5 // pred_check
        %p1518 = pneg %p1517
      $region86: #{tpu_custom_call.1} parent=5 // pred_check_branch
        %1520 = sbr.rel (%p1518) target = $region88
      $region87: #{tpu_custom_call.1} parent=5 // pred_region
        %s1521 = ssub.s32 %s28, 2
        // Predicated region
        $region89: #{tpu_custom_call.1} parent=87 // pred_check
          %p1522 = pneg %p319
        $region90: #{tpu_custom_call.1} parent=87 // pred_check_branch
          %1524 = sbr.rel (%p1522) target = $region92
        $region91: #{tpu_custom_call.1} parent=87 // pred_region
          %s1525 = sand.u32 %s304, 1
          %s1526 = scalar_lea.sflag [#allocation5], %s1525
          %s1527 = sand.u32 %s304, 1
          %s1528 = smul.addr %s1527, 8
          %s1529 = scalar_lea.vmem [#allocation8], %s1528
          %1530 = dma.done %s1526, 128
        $region92: #{tpu_custom_call.1} parent=87 // pred_fallthru
          _
        // Predicated region
        $region93: #{tpu_custom_call.1} parent=87 // pred_check
          %p1531 = pneg %p345
        $region94: #{tpu_custom_call.1} parent=87 // pred_check_branch
          %1533 = sbr.rel (%p1531) target = $region96
        $region95: #{tpu_custom_call.1} parent=87 // pred_region
          %s1534 = sand.u32 %s330, 1
          %s1535 = scalar_lea.sflag [#allocation10], %s1534
          %s1536 = sand.u32 %s330, 1
          %s1537 = smul.addr %s1536, 8
          %s1538 = scalar_lea.vmem [#allocation9], %s1537
          %1539 = dma.done %s1535, 128
        $region96: #{tpu_custom_call.1} parent=87 // pred_fallthru
          _
      $region88: #{tpu_custom_call.1} parent=5 // pred_fallthru
        _
    $region6: #{tpu_custom_call.1} parent=1 // loop_footer
      %s32 = sadd.s32 1, %s28
    $region7: #{tpu_custom_call.1} parent=1 // loop_footer_branch
      %27 = sbr.rel target = $region3
    $region8: #{tpu_custom_call.1} parent=1 // loop_exit
      _
    %1540 = vsyncpa [#allocation4], 1
    %s1541 = scalar_lea.sflag [#allocation4], 1
    %1542 = vsyncpa %s1541, 1
    %1543 = vsyncpa [#allocation7], 1
    %1544 = vsyncpa [#allocation5], 1
    %s1545 = scalar_lea.sflag [#allocation5], 1
    %1546 = vsyncpa %s1545, 1
    %1547 = vsyncpa [#allocation10], 1
    %s1548 = scalar_lea.sflag [#allocation10], 1
    %1549 = vsyncpa %s1548, 1

</llo_original>
